<compile_context>
chip_gen: v5e
topology: v5e:2x2
jax: 0.10.0
libtpu: 0.0.40
codegen_flags: <defaults>
</compile_context>

<pallas_src>
import numpy as np
import jax
import jax.numpy as jnp
from jax.experimental import pallas as pl
from jax.experimental.pallas import tpu as pltpu

IMG_ROWS = 16
IMG_COLS = 16
CONV_SIZE = 3
C_OUT = 32            # conv1: nn.Conv2d(1, 32, conv_size)
HIDDEN = 64           # fc1:   nn.Linear(flatten_size, 64)
N_CLASSES = 10        # fc2/fc3: nn.Linear(64, 10)

H_OUT = IMG_ROWS - CONV_SIZE + 1      # 14
W_OUT = IMG_COLS - CONV_SIZE + 1      # 14
HP = H_OUT // 2                       # 7
WP = W_OUT // 2                       # 7
P = HP * WP                           # 49 pooled positions
P_PAD = 128                           # pooled positions padded to one lane group
N_TAPS = CONV_SIZE * CONV_SIZE        # 9
SLOT_STRIDE = 4 * P_PAD               # 512 lanes per batch row in the cols layout
F_PAD = C_OUT * P_PAD                 # 4096 padded flatten size
HEAD_PAD = 128                        # fused fc2|fc3 output padded to 128 lanes

TB_CONV = 8                           # batch rows per conv grid step


# ----------------------------- kernels --------------------------------------

def _conv_pool_kernel(cols_ref, w_ref, b_ref, feat_ref):
    """Fused conv(1->32, valid) + 2x2 max-pool + bias + ReLU for TB_CONV rows.

    cols_ref: (9, TB*512)    im2col patches, lane = b*512 + slot*128 + pooled_pos
    w_ref:    (32, 9)        conv weight, channel-major
    b_ref:    (32, 1)        conv bias (column vector)
    feat_ref: (TB, 32, 128)  channel-major, position-padded features (flatten order)
    """
    # One MXU matmul for all TB rows and all 4 pool-window slots.
    conv = jnp.dot(w_ref[...], cols_ref[...], preferred_element_type=jnp.float32)
    bias = b_ref[...]                                  # (32, 1), broadcast once
    for b in range(feat_ref.shape[0]):                 # static unroll over TB rows
        base = b * SLOT_STRIDE
        # 128-aligned lane slices -> no hidden copies.
        m01 = jnp.maximum(conv[:, base:base + P_PAD],
                          conv[:, base + P_PAD:base + 2 * P_PAD])
        m23 = jnp.maximum(conv[:, base + 2 * P_PAD:base + 3 * P_PAD],
                          conv[:, base + 3 * P_PAD:base + 4 * P_PAD])
        # bias + ReLU after the 4-way max (exactly equivalent, 1 pass instead of 4).
        feat_ref[b] = jnp.maximum(jnp.maximum(m01, m23) + bias, 0.0)


def _fc_kernel(x_ref, w1_ref, b1_ref, w23_ref, b23_ref, o_ref):
    """fc1 -> dropout(eval identity) -> fused [fc2 | fc3] for one batch tile."""
    h = jnp.dot(x_ref[...], w1_ref[...],
                preferred_element_type=jnp.float32) + b1_ref[...]
    # TODO(synk): nn.Dropout(p=0.5) is the eval-mode identity here; train-mode
    # masking would use pltpu.prng_seed / pltpu.prng_random_bits.
    o_ref[...] = jnp.dot(h, w23_ref[...],
                         preferred_element_type=jnp.float32) + b23_ref[...]


# ----------------------------- wrappers --------------------------------------

def _round_up(n, m):
    return (n + m - 1) // m * m


def _im2col_cols(x, b_pad):
    """x: (B, 1, H, W) -> cols: (9, b_pad*512), lane = b*512 + slot*128 + pos."""
    B = x.shape[0]
    x2 = x[:, 0]                                             # (B, H, W)
    taps = jnp.stack([x2[:, kh:kh + H_OUT, kw:kw + W_OUT]
                      for kh in range(CONV_SIZE) for kw in range(CONV_SIZE)],
                     axis=1)                                 # (B, 9, 14, 14)
    t = taps[:, :, :2 * HP, :2 * WP].reshape(B, N_TAPS, HP, 2, WP, 2)
    t = t.transpose(0, 1, 3, 5, 2, 4).reshape(B, N_TAPS, 4, P)   # (b, tap, slot, pos)
    t = jnp.pad(t, ((0, b_pad - B), (0, 0), (0, 0), (0, P_PAD - P)))
    cols = t.transpose(1, 0, 2, 3).reshape(N_TAPS, b_pad * SLOT_STRIDE)
    return cols


def _conv_relu_pool(cols, w_cm, b_col, b_pad):
    grid = (b_pad // TB_CONV,)
    cost = pl.CostEstimate(
        flops=2 * C_OUT * N_TAPS * b_pad * SLOT_STRIDE + 6 * b_pad * C_OUT * P_PAD,
        transcendentals=0,
        bytes_accessed=4 * (N_TAPS * b_pad * SLOT_STRIDE + C_OUT * N_TAPS + C_OUT
                            + b_pad * C_OUT * P_PAD))
    return pl.pallas_call(
        _conv_pool_kernel,
        out_shape=jax.ShapeDtypeStruct((b_pad, C_OUT, P_PAD), jnp.float32),
        grid=grid,
        in_specs=[
            pl.BlockSpec((N_TAPS, TB_CONV * SLOT_STRIDE), lambda i: (0, i)),
            pl.BlockSpec((C_OUT, N_TAPS), lambda i: (0, 0)),
            pl.BlockSpec((C_OUT, 1), lambda i: (0, 0)),
        ],
        out_specs=pl.BlockSpec((TB_CONV, C_OUT, P_PAD), lambda i: (i, 0, 0)),
        compiler_params=pltpu.CompilerParams(
            dimension_semantics=("parallel",),
            vmem_limit_bytes=32 * 1024 * 1024),
        cost_estimate=cost,
    )(cols, w_cm, b_col)


def _fc_head(feats, w1p, b1, w23p, b23p, tb_fc):
    b_pad = feats.shape[0]
    grid = (b_pad // tb_fc,)
    cost = pl.CostEstimate(
        flops=2 * b_pad * F_PAD * HIDDEN + 2 * b_pad * HIDDEN * HEAD_PAD,
        transcendentals=0,
        bytes_accessed=4 * (b_pad * F_PAD + F_PAD * HIDDEN + HIDDEN
                            + HIDDEN * HEAD_PAD + HEAD_PAD + b_pad * HEAD_PAD))
    return pl.pallas_call(
        _fc_kernel,
        out_shape=jax.ShapeDtypeStruct((b_pad, HEAD_PAD), jnp.float32),
        grid=grid,
        in_specs=[
            pl.BlockSpec((tb_fc, F_PAD), lambda i: (i, 0)),
            pl.BlockSpec((F_PAD, HIDDEN), lambda i: (0, 0)),   # resident weights
            pl.BlockSpec((1, HIDDEN), lambda i: (0, 0)),
            pl.BlockSpec((HIDDEN, HEAD_PAD), lambda i: (0, 0)),
            pl.BlockSpec((1, HEAD_PAD), lambda i: (0, 0)),
        ],
        out_specs=pl.BlockSpec((tb_fc, HEAD_PAD), lambda i: (i, 0)),
        compiler_params=pltpu.CompilerParams(
            dimension_semantics=("parallel",),
            vmem_limit_bytes=32 * 1024 * 1024),
        cost_estimate=cost,
    )(feats, w1p, b1, w23p, b23p)


def cnn_1c_forward(x, params):
    """Equivalent of CNN_1C.forward(x); returns (out_first_digit, out_second_digit)."""
    B = x.shape[0]
    # FC batch tile: small batches use 8; large batches use 256 (fits 32 MiB VMEM
    # budget on v5e/v6e/v7x: 2*256*4096*4 + 2*4096*64*4 ~= 10 MiB).
    tb_fc = 256 if B >= 256 else TB_CONV
    b_pad = _round_up(B, tb_fc)          # tb_fc is a multiple of TB_CONV

    # Conv + bias + ReLU + 2x2 max-pool (lane-dense, channel-major output).
    cols = _im2col_cols(x, b_pad)                              # (9, b_pad*512)
    w_cm = params["conv_w9"].T                                 # (32, 9)
    b_col = params["conv_b"].T                                 # (32, 1)
    feats3 = _conv_relu_pool(cols, w_cm, b_col, b_pad)         # (b_pad, 32, 128)
    feats = feats3.reshape(b_pad, F_PAD)                       # contiguous -> free

    # fc1 weight permuted + zero-padded to the kernel's padded channel-major layout:
    # w1p[c*128 + p, j] = fc1_w[c*49 + p, j] for p < 49 else 0.
    w1p = jnp.pad(params["fc1_w"].reshape(C_OUT, P, HIDDEN),
                  ((0, 0), (0, P_PAD - P), (0, 0))).reshape(F_PAD, HIDDEN)
    # fc2 | fc3 fused and padded to a full lane group (unmasked stores).
    w23p = jnp.pad(jnp.concatenate([params["fc2_w"], params["fc3_w"]], axis=1),
                   ((0, 0), (0, HEAD_PAD - 2 * N_CLASSES)))
    b23p = jnp.pad(jnp.concatenate([params["fc2_b"], params["fc3_b"]], axis=1),
                   ((0, 0), (0, HEAD_PAD - 2 * N_CLASSES)))

    out = _fc_head(feats, w1p, params["fc1_b"], w23p, b23p, tb_fc)   # (b_pad, 128)
    return out[:B, :N_CLASSES], out[:B, N_CLASSES:2 * N_CLASSES]


# ----------------------------- params / reference ----------------------------

def init_params(key):
    ks = jax.random.split(key, 8)
    flatten_size = HP * WP * C_OUT                        # 7*7*32 = 1568
    conv_w = 0.1 * jax.random.normal(ks[0], (CONV_SIZE, CONV_SIZE, C_OUT), jnp.float32)
    return {
        "conv_w9": conv_w.reshape(N_TAPS, C_OUT),         # (9, 32), tap-major
        "conv_b": 0.1 * jax.random.normal(ks[1], (1, C_OUT), jnp.float32),
        "fc1_w": 0.05 * jax.random.normal(ks[2], (flatten_size, HIDDEN), jnp.float32),
        "fc1_b": 0.05 * jax.random.normal(ks[3], (1, HIDDEN), jnp.float32),
        "fc2_w": 0.1 * jax.random.normal(ks[4], (HIDDEN, N_CLASSES), jnp.float32),
        "fc2_b": 0.1 * jax.random.normal(ks[5], (1, N_CLASSES), jnp.float32),
        "fc3_w": 0.1 * jax.random.normal(ks[6], (HIDDEN, N_CLASSES), jnp.float32),
        "fc3_b": 0.1 * jax.random.normal(ks[7], (1, N_CLASSES), jnp.float32),
    }


def reference_forward(x, params):
    """Pure-JAX reference of the same forward pass (for validation)."""
    B = x.shape[0]
    x2 = x[:, 0]
    taps = jnp.stack([x2[:, kh:kh + H_OUT, kw:kw + W_OUT]
                      for kh in range(CONV_SIZE) for kw in range(CONV_SIZE)], axis=-1)
    conv = jnp.einsum("bhwt,tc->bhwc", taps, params["conv_w9"]) + params["conv_b"][0]
    conv = jnp.maximum(conv, 0.0)
    pooled = conv[:, :2 * HP, :2 * WP, :].reshape(B, HP, 2, WP, 2, C_OUT).max(axis=(2, 4))
    feats = pooled.transpose(0, 3, 1, 2).reshape(B, -1)       # PyTorch NCHW flatten
    h = feats @ params["fc1_w"] + params["fc1_b"][0]
    o1 = h @ params["fc2_w"] + params["fc2_b"][0]
    o2 = h @ params["fc3_w"] + params["fc3_b"][0]
    return o1, o2


# ----------------------------- main ------------------------------------------

if __name__ == "__main__":
    key = jax.random.PRNGKey(0)
    kx, kp = jax.random.split(key)
    x = jax.random.normal(kx, (2, 1, IMG_ROWS, IMG_COLS), jnp.float32)  # NCHW, C=1
    params = init_params(kp)

    out1, out2 = jax.block_until_ready(jax.jit(cnn_1c_forward)(x, params))

    ref1, ref2 = reference_forward(x, params)
    assert out1.shape == (2, N_CLASSES) and out2.shape == (2, N_CLASSES)
    assert out1.dtype == jnp.float32 and out2.dtype == jnp.float32
    assert np.allclose(np.asarray(out1), np.asarray(ref1), rtol=2e-2, atol=2e-2)
    assert np.allclose(np.asarray(out2), np.asarray(ref2), rtol=2e-2, atol=2e-2)
    print("KERNEL_OK")
</pallas_src>

<mosaic_0001>
module attributes {stable_mosaic.version = 11 : i64} {
  func.func @_conv_pool_kernel(%arg0: i32, %arg1: memref<9x4096xf32, #tpu.memory_space<vmem>>, %arg2: memref<32x9xf32, #tpu.memory_space<vmem>>, %arg3: memref<32x1xf32, #tpu.memory_space<vmem>>, %arg4: memref<8x32x128xf32, #tpu.memory_space<vmem>>) attributes {dimension_semantics = [#tpu.dimension_semantics<parallel>], iteration_bounds = array<i64: 1>, scalar_prefetch = 0 : i64, scratch_operands = 0 : i64, tpu.core_type = #tpu.core_type<tc>, window_params = [{transform_indices = @transform_0, window_bounds = array<i64: 9, 4096>}, {pipeline_mode = #tpu.pipeline_mode<synchronous>, transform_indices = @transform_1, window_bounds = array<i64: 32, 9>}, {pipeline_mode = #tpu.pipeline_mode<synchronous>, transform_indices = @transform_2, window_bounds = array<i64: 32, 1>}, {transform_indices = @transform_3, window_bounds = array<i64: 8, 32, 128>}]} {
    %c0 = arith.constant 0 : index
    %c0_0 = arith.constant 0 : index
    %0 = vector.load %arg2[%c0, %c0_0] : memref<32x9xf32, #tpu.memory_space<vmem>>, vector<32x9xf32>
    %c0_1 = arith.constant 0 : index
    %c0_2 = arith.constant 0 : index
    %1 = vector.load %arg1[%c0_1, %c0_2] : memref<9x4096xf32, #tpu.memory_space<vmem>>, vector<9x4096xf32>
    %cst = arith.constant dense<0.000000e+00> : vector<32x4096xf32>
    %2 = tpu.matmul %0, %1, %cst {dimension_numbers = #tpu.dot_dimension_numbers<[1], [0], [0], [1], [0, 0, 1, 1], [], []>} : vector<32x9xf32>, vector<9x4096xf32>, vector<32x4096xf32> -> vector<32x4096xf32>
    %c0_3 = arith.constant 0 : index
    %c0_4 = arith.constant 0 : index
    %3 = vector.load %arg3[%c0_3, %c0_4] : memref<32x1xf32, #tpu.memory_space<vmem>>, vector<32x1xf32>
    %4 = vector.extract_strided_slice %2 {offsets = [0, 0], sizes = [32, 128], strides = [1, 1]} : vector<32x4096xf32> to vector<32x128xf32>
    %5 = vector.extract_strided_slice %2 {offsets = [0, 128], sizes = [32, 128], strides = [1, 1]} : vector<32x4096xf32> to vector<32x128xf32>
    %6 = arith.maximumf %4, %5 : vector<32x128xf32>
    %7 = vector.extract_strided_slice %2 {offsets = [0, 256], sizes = [32, 128], strides = [1, 1]} : vector<32x4096xf32> to vector<32x128xf32>
    %8 = vector.extract_strided_slice %2 {offsets = [0, 384], sizes = [32, 128], strides = [1, 1]} : vector<32x4096xf32> to vector<32x128xf32>
    %9 = arith.maximumf %7, %8 : vector<32x128xf32>
    %10 = arith.maximumf %6, %9 : vector<32x128xf32>
    %11 = vector.broadcast %3 : vector<32x1xf32> to vector<32x128xf32>
    %12 = arith.addf %10, %11 : vector<32x128xf32>
    %cst_5 = arith.constant 0.000000e+00 : f32
    %13 = vector.broadcast %cst_5 : f32 to vector<32x128xf32>
    %14 = arith.maximumf %12, %13 : vector<32x128xf32>
    %c0_6 = arith.constant 0 : index
    %c0_7 = arith.constant 0 : index
    %c0_8 = arith.constant 0 : index
    %15 = vector.load %arg4[%c0_6, %c0_7, %c0_8] : memref<8x32x128xf32, #tpu.memory_space<vmem>>, vector<1x32x128xf32>
    %16 = vector.shape_cast %15 : vector<1x32x128xf32> to vector<32x128xf32>
    %17 = vector.shape_cast %14 : vector<32x128xf32> to vector<1x32x128xf32>
    tpu.vector_store %arg4[%c0_6, %c0_7, %c0_8], %17 {strides = array<i32>} : memref<8x32x128xf32, #tpu.memory_space<vmem>>, vector<1x32x128xf32>,
    %18 = vector.extract_strided_slice %2 {offsets = [0, 512], sizes = [32, 128], strides = [1, 1]} : vector<32x4096xf32> to vector<32x128xf32>
    %19 = vector.extract_strided_slice %2 {offsets = [0, 640], sizes = [32, 128], strides = [1, 1]} : vector<32x4096xf32> to vector<32x128xf32>
    %20 = arith.maximumf %18, %19 : vector<32x128xf32>
    %21 = vector.extract_strided_slice %2 {offsets = [0, 768], sizes = [32, 128], strides = [1, 1]} : vector<32x4096xf32> to vector<32x128xf32>
    %22 = vector.extract_strided_slice %2 {offsets = [0, 896], sizes = [32, 128], strides = [1, 1]} : vector<32x4096xf32> to vector<32x128xf32>
    %23 = arith.maximumf %21, %22 : vector<32x128xf32>
    %24 = arith.maximumf %20, %23 : vector<32x128xf32>
    %25 = vector.broadcast %3 : vector<32x1xf32> to vector<32x128xf32>
    %26 = arith.addf %24, %25 : vector<32x128xf32>
    %cst_9 = arith.constant 0.000000e+00 : f32
    %27 = vector.broadcast %cst_9 : f32 to vector<32x128xf32>
    %28 = arith.maximumf %26, %27 : vector<32x128xf32>
    %c1 = arith.constant 1 : index
    %c0_10 = arith.constant 0 : index
    %c0_11 = arith.constant 0 : index
    %29 = vector.load %arg4[%c1, %c0_10, %c0_11] : memref<8x32x128xf32, #tpu.memory_space<vmem>>, vector<1x32x128xf32>
    %30 = vector.shape_cast %29 : vector<1x32x128xf32> to vector<32x128xf32>
    %31 = vector.shape_cast %28 : vector<32x128xf32> to vector<1x32x128xf32>
    tpu.vector_store %arg4[%c1, %c0_10, %c0_11], %31 {strides = array<i32>} : memref<8x32x128xf32, #tpu.memory_space<vmem>>, vector<1x32x128xf32>,
    %32 = vector.extract_strided_slice %2 {offsets = [0, 1024], sizes = [32, 128], strides = [1, 1]} : vector<32x4096xf32> to vector<32x128xf32>
    %33 = vector.extract_strided_slice %2 {offsets = [0, 1152], sizes = [32, 128], strides = [1, 1]} : vector<32x4096xf32> to vector<32x128xf32>
    %34 = arith.maximumf %32, %33 : vector<32x128xf32>
    %35 = vector.extract_strided_slice %2 {offsets = [0, 1280], sizes = [32, 128], strides = [1, 1]} : vector<32x4096xf32> to vector<32x128xf32>
    %36 = vector.extract_strided_slice %2 {offsets = [0, 1408], sizes = [32, 128], strides = [1, 1]} : vector<32x4096xf32> to vector<32x128xf32>
    %37 = arith.maximumf %35, %36 : vector<32x128xf32>
    %38 = arith.maximumf %34, %37 : vector<32x128xf32>
    %39 = vector.broadcast %3 : vector<32x1xf32> to vector<32x128xf32>
    %40 = arith.addf %38, %39 : vector<32x128xf32>
    %cst_12 = arith.constant 0.000000e+00 : f32
    %41 = vector.broadcast %cst_12 : f32 to vector<32x128xf32>
    %42 = arith.maximumf %40, %41 : vector<32x128xf32>
    %c2 = arith.constant 2 : index
    %c0_13 = arith.constant 0 : index
    %c0_14 = arith.constant 0 : index
    %43 = vector.load %arg4[%c2, %c0_13, %c0_14] : memref<8x32x128xf32, #tpu.memory_space<vmem>>, vector<1x32x128xf32>
    %44 = vector.shape_cast %43 : vector<1x32x128xf32> to vector<32x128xf32>
    %45 = vector.shape_cast %42 : vector<32x128xf32> to vector<1x32x128xf32>
    tpu.vector_store %arg4[%c2, %c0_13, %c0_14], %45 {strides = array<i32>} : memref<8x32x128xf32, #tpu.memory_space<vmem>>, vector<1x32x128xf32>,
    %46 = vector.extract_strided_slice %2 {offsets = [0, 1536], sizes = [32, 128], strides = [1, 1]} : vector<32x4096xf32> to vector<32x128xf32>
    %47 = vector.extract_strided_slice %2 {offsets = [0, 1664], sizes = [32, 128], strides = [1, 1]} : vector<32x4096xf32> to vector<32x128xf32>
    %48 = arith.maximumf %46, %47 : vector<32x128xf32>
    %49 = vector.extract_strided_slice %2 {offsets = [0, 1792], sizes = [32, 128], strides = [1, 1]} : vector<32x4096xf32> to vector<32x128xf32>
    %50 = vector.extract_strided_slice %2 {offsets = [0, 1920], sizes = [32, 128], strides = [1, 1]} : vector<32x4096xf32> to vector<32x128xf32>
    %51 = arith.maximumf %49, %50 : vector<32x128xf32>
    %52 = arith.maximumf %48, %51 : vector<32x128xf32>
    %53 = vector.broadcast %3 : vector<32x1xf32> to vector<32x128xf32>
    %54 = arith.addf %52, %53 : vector<32x128xf32>
    %cst_15 = arith.constant 0.000000e+00 : f32
    %55 = vector.broadcast %cst_15 : f32 to vector<32x128xf32>
    %56 = arith.maximumf %54, %55 : vector<32x128xf32>
    %c3 = arith.constant 3 : index
    %c0_16 = arith.constant 0 : index
    %c0_17 = arith.constant 0 : index
    %57 = vector.load %arg4[%c3, %c0_16, %c0_17] : memref<8x32x128xf32, #tpu.memory_space<vmem>>, vector<1x32x128xf32>
    %58 = vector.shape_cast %57 : vector<1x32x128xf32> to vector<32x128xf32>
    %59 = vector.shape_cast %56 : vector<32x128xf32> to vector<1x32x128xf32>
    tpu.vector_store %arg4[%c3, %c0_16, %c0_17], %59 {strides = array<i32>} : memref<8x32x128xf32, #tpu.memory_space<vmem>>, vector<1x32x128xf32>,
    %60 = vector.extract_strided_slice %2 {offsets = [0, 2048], sizes = [32, 128], strides = [1, 1]} : vector<32x4096xf32> to vector<32x128xf32>
    %61 = vector.extract_strided_slice %2 {offsets = [0, 2176], sizes = [32, 128], strides = [1, 1]} : vector<32x4096xf32> to vector<32x128xf32>
    %62 = arith.maximumf %60, %61 : vector<32x128xf32>
    %63 = vector.extract_strided_slice %2 {offsets = [0, 2304], sizes = [32, 128], strides = [1, 1]} : vector<32x4096xf32> to vector<32x128xf32>
    %64 = vector.extract_strided_slice %2 {offsets = [0, 2432], sizes = [32, 128], strides = [1, 1]} : vector<32x4096xf32> to vector<32x128xf32>
    %65 = arith.maximumf %63, %64 : vector<32x128xf32>
    %66 = arith.maximumf %62, %65 : vector<32x128xf32>
    %67 = vector.broadcast %3 : vector<32x1xf32> to vector<32x128xf32>
    %68 = arith.addf %66, %67 : vector<32x128xf32>
    %cst_18 = arith.constant 0.000000e+00 : f32
    %69 = vector.broadcast %cst_18 : f32 to vector<32x128xf32>
    %70 = arith.maximumf %68, %69 : vector<32x128xf32>
    %c4 = arith.constant 4 : index
    %c0_19 = arith.constant 0 : index
    %c0_20 = arith.constant 0 : index
    %71 = vector.load %arg4[%c4, %c0_19, %c0_20] : memref<8x32x128xf32, #tpu.memory_space<vmem>>, vector<1x32x128xf32>
    %72 = vector.shape_cast %71 : vector<1x32x128xf32> to vector<32x128xf32>
    %73 = vector.shape_cast %70 : vector<32x128xf32> to vector<1x32x128xf32>
    tpu.vector_store %arg4[%c4, %c0_19, %c0_20], %73 {strides = array<i32>} : memref<8x32x128xf32, #tpu.memory_space<vmem>>, vector<1x32x128xf32>,
    %74 = vector.extract_strided_slice %2 {offsets = [0, 2560], sizes = [32, 128], strides = [1, 1]} : vector<32x4096xf32> to vector<32x128xf32>
    %75 = vector.extract_strided_slice %2 {offsets = [0, 2688], sizes = [32, 128], strides = [1, 1]} : vector<32x4096xf32> to vector<32x128xf32>
    %76 = arith.maximumf %74, %75 : vector<32x128xf32>
    %77 = vector.extract_strided_slice %2 {offsets = [0, 2816], sizes = [32, 128], strides = [1, 1]} : vector<32x4096xf32> to vector<32x128xf32>
    %78 = vector.extract_strided_slice %2 {offsets = [0, 2944], sizes = [32, 128], strides = [1, 1]} : vector<32x4096xf32> to vector<32x128xf32>
    %79 = arith.maximumf %77, %78 : vector<32x128xf32>
    %80 = arith.maximumf %76, %79 : vector<32x128xf32>
    %81 = vector.broadcast %3 : vector<32x1xf32> to vector<32x128xf32>
    %82 = arith.addf %80, %81 : vector<32x128xf32>
    %cst_21 = arith.constant 0.000000e+00 : f32
    %83 = vector.broadcast %cst_21 : f32 to vector<32x128xf32>
    %84 = arith.maximumf %82, %83 : vector<32x128xf32>
    %c5 = arith.constant 5 : index
    %c0_22 = arith.constant 0 : index
    %c0_23 = arith.constant 0 : index
    %85 = vector.load %arg4[%c5, %c0_22, %c0_23] : memref<8x32x128xf32, #tpu.memory_space<vmem>>, vector<1x32x128xf32>
    %86 = vector.shape_cast %85 : vector<1x32x128xf32> to vector<32x128xf32>
    %87 = vector.shape_cast %84 : vector<32x128xf32> to vector<1x32x128xf32>
    tpu.vector_store %arg4[%c5, %c0_22, %c0_23], %87 {strides = array<i32>} : memref<8x32x128xf32, #tpu.memory_space<vmem>>, vector<1x32x128xf32>,
    %88 = vector.extract_strided_slice %2 {offsets = [0, 3072], sizes = [32, 128], strides = [1, 1]} : vector<32x4096xf32> to vector<32x128xf32>
    %89 = vector.extract_strided_slice %2 {offsets = [0, 3200], sizes = [32, 128], strides = [1, 1]} : vector<32x4096xf32> to vector<32x128xf32>
    %90 = arith.maximumf %88, %89 : vector<32x128xf32>
    %91 = vector.extract_strided_slice %2 {offsets = [0, 3328], sizes = [32, 128], strides = [1, 1]} : vector<32x4096xf32> to vector<32x128xf32>
    %92 = vector.extract_strided_slice %2 {offsets = [0, 3456], sizes = [32, 128], strides = [1, 1]} : vector<32x4096xf32> to vector<32x128xf32>
    %93 = arith.maximumf %91, %92 : vector<32x128xf32>
    %94 = arith.maximumf %90, %93 : vector<32x128xf32>
    %95 = vector.broadcast %3 : vector<32x1xf32> to vector<32x128xf32>
    %96 = arith.addf %94, %95 : vector<32x128xf32>
    %cst_24 = arith.constant 0.000000e+00 : f32
    %97 = vector.broadcast %cst_24 : f32 to vector<32x128xf32>
    %98 = arith.maximumf %96, %97 : vector<32x128xf32>
    %c6 = arith.constant 6 : index
    %c0_25 = arith.constant 0 : index
    %c0_26 = arith.constant 0 : index
    %99 = vector.load %arg4[%c6, %c0_25, %c0_26] : memref<8x32x128xf32, #tpu.memory_space<vmem>>, vector<1x32x128xf32>
    %100 = vector.shape_cast %99 : vector<1x32x128xf32> to vector<32x128xf32>
    %101 = vector.shape_cast %98 : vector<32x128xf32> to vector<1x32x128xf32>
    tpu.vector_store %arg4[%c6, %c0_25, %c0_26], %101 {strides = array<i32>} : memref<8x32x128xf32, #tpu.memory_space<vmem>>, vector<1x32x128xf32>,
    %102 = vector.extract_strided_slice %2 {offsets = [0, 3584], sizes = [32, 128], strides = [1, 1]} : vector<32x4096xf32> to vector<32x128xf32>
    %103 = vector.extract_strided_slice %2 {offsets = [0, 3712], sizes = [32, 128], strides = [1, 1]} : vector<32x4096xf32> to vector<32x128xf32>
    %104 = arith.maximumf %102, %103 : vector<32x128xf32>
    %105 = vector.extract_strided_slice %2 {offsets = [0, 3840], sizes = [32, 128], strides = [1, 1]} : vector<32x4096xf32> to vector<32x128xf32>
    %106 = vector.extract_strided_slice %2 {offsets = [0, 3968], sizes = [32, 128], strides = [1, 1]} : vector<32x4096xf32> to vector<32x128xf32>
    %107 = arith.maximumf %105, %106 : vector<32x128xf32>
    %108 = arith.maximumf %104, %107 : vector<32x128xf32>
    %109 = vector.broadcast %3 : vector<32x1xf32> to vector<32x128xf32>
    %110 = arith.addf %108, %109 : vector<32x128xf32>
    %cst_27 = arith.constant 0.000000e+00 : f32
    %111 = vector.broadcast %cst_27 : f32 to vector<32x128xf32>
    %112 = arith.maximumf %110, %111 : vector<32x128xf32>
    %c7 = arith.constant 7 : index
    %c0_28 = arith.constant 0 : index
    %c0_29 = arith.constant 0 : index
    %113 = vector.load %arg4[%c7, %c0_28, %c0_29] : memref<8x32x128xf32, #tpu.memory_space<vmem>>, vector<1x32x128xf32>
    %114 = vector.shape_cast %113 : vector<1x32x128xf32> to vector<32x128xf32>
    %115 = vector.shape_cast %112 : vector<32x128xf32> to vector<1x32x128xf32>
    tpu.vector_store %arg4[%c7, %c0_28, %c0_29], %115 {strides = array<i32>} : memref<8x32x128xf32, #tpu.memory_space<vmem>>, vector<1x32x128xf32>,
    return
  }
  func.func @transform_0(%arg0: i32) -> (i32, i32) {
    %c0_i32 = arith.constant 0 : i32
    %c0_i32_0 = arith.constant 0 : i32
    return %c0_i32, %arg0 : i32, i32
  }
  func.func @transform_1(%arg0: i32) -> (i32, i32) {
    %c0_i32 = arith.constant 0 : i32
    %c0_i32_0 = arith.constant 0 : i32
    %c0_i32_1 = arith.constant 0 : i32
    return %c0_i32, %c0_i32_0 : i32, i32
  }
  func.func @transform_2(%arg0: i32) -> (i32, i32) {
    %c0_i32 = arith.constant 0 : i32
    %c0_i32_0 = arith.constant 0 : i32
    %c0_i32_1 = arith.constant 0 : i32
    return %c0_i32, %c0_i32_0 : i32, i32
  }
  func.func @transform_3(%arg0: i32) -> (i32, i32, i32) {
    %c0_i32 = arith.constant 0 : i32
    %c0_i32_0 = arith.constant 0 : i32
    %c0_i32_1 = arith.constant 0 : i32
    return %arg0, %c0_i32, %c0_i32_0 : i32, i32, i32
  }
}

module attributes {stable_mosaic.version = 11 : i64} {
  func.func @_fc_kernel(%arg0: i32, %arg1: memref<8x4096xf32, #tpu.memory_space<vmem>>, %arg2: memref<4096x64xf32, #tpu.memory_space<vmem>>, %arg3: memref<1x64xf32, #tpu.memory_space<vmem>>, %arg4: memref<64x128xf32, #tpu.memory_space<vmem>>, %arg5: memref<1x128xf32, #tpu.memory_space<vmem>>, %arg6: memref<8x128xf32, #tpu.memory_space<vmem>>) attributes {dimension_semantics = [#tpu.dimension_semantics<parallel>], iteration_bounds = array<i64: 1>, scalar_prefetch = 0 : i64, scratch_operands = 0 : i64, tpu.core_type = #tpu.core_type<tc>, window_params = [{transform_indices = @transform_0, window_bounds = array<i64: 8, 4096>}, {pipeline_mode = #tpu.pipeline_mode<synchronous>, transform_indices = @transform_1, window_bounds = array<i64: 4096, 64>}, {pipeline_mode = #tpu.pipeline_mode<synchronous>, transform_indices = @transform_2, window_bounds = array<i64: 1, 64>}, {pipeline_mode = #tpu.pipeline_mode<synchronous>, transform_indices = @transform_3, window_bounds = array<i64: 64, 128>}, {pipeline_mode = #tpu.pipeline_mode<synchronous>, transform_indices = @transform_4, window_bounds = array<i64: 1, 128>}, {transform_indices = @transform_5, window_bounds = array<i64: 8, 128>}]} {
    %c0 = arith.constant 0 : index
    %c0_0 = arith.constant 0 : index
    %0 = vector.load %arg1[%c0, %c0_0] : memref<8x4096xf32, #tpu.memory_space<vmem>>, vector<8x4096xf32>
    %c0_1 = arith.constant 0 : index
    %c0_2 = arith.constant 0 : index
    %1 = vector.load %arg2[%c0_1, %c0_2] : memref<4096x64xf32, #tpu.memory_space<vmem>>, vector<4096x64xf32>
    %cst = arith.constant dense<0.000000e+00> : vector<8x64xf32>
    %2 = tpu.matmul %0, %1, %cst {dimension_numbers = #tpu.dot_dimension_numbers<[1], [0], [0], [1], [0, 0, 1, 1], [], []>} : vector<8x4096xf32>, vector<4096x64xf32>, vector<8x64xf32> -> vector<8x64xf32>
    %c0_3 = arith.constant 0 : index
    %c0_4 = arith.constant 0 : index
    %3 = vector.load %arg3[%c0_3, %c0_4] : memref<1x64xf32, #tpu.memory_space<vmem>>, vector<1x64xf32>
    %4 = vector.broadcast %3 : vector<1x64xf32> to vector<8x64xf32>
    %5 = arith.addf %2, %4 : vector<8x64xf32>
    %c0_5 = arith.constant 0 : index
    %c0_6 = arith.constant 0 : index
    %6 = vector.load %arg4[%c0_5, %c0_6] : memref<64x128xf32, #tpu.memory_space<vmem>>, vector<64x128xf32>
    %cst_7 = arith.constant dense<0.000000e+00> : vector<8x128xf32>
    %7 = tpu.matmul %5, %6, %cst_7 {dimension_numbers = #tpu.dot_dimension_numbers<[1], [0], [0], [1], [0, 0, 1, 1], [], []>} : vector<8x64xf32>, vector<64x128xf32>, vector<8x128xf32> -> vector<8x128xf32>
    %c0_8 = arith.constant 0 : index
    %c0_9 = arith.constant 0 : index
    %8 = vector.load %arg5[%c0_8, %c0_9] : memref<1x128xf32, #tpu.memory_space<vmem>>, vector<1x128xf32>
    %9 = vector.broadcast %8 : vector<1x128xf32> to vector<8x128xf32>
    %10 = arith.addf %7, %9 : vector<8x128xf32>
    %c0_10 = arith.constant 0 : index
    %c0_11 = arith.constant 0 : index
    %11 = vector.load %arg6[%c0_10, %c0_11] : memref<8x128xf32, #tpu.memory_space<vmem>>, vector<8x128xf32>
    tpu.vector_store %arg6[%c0_10, %c0_11], %10 {strides = array<i32>} : memref<8x128xf32, #tpu.memory_space<vmem>>, vector<8x128xf32>,
    return
  }
  func.func @transform_0(%arg0: i32) -> (i32, i32) {
    %c0_i32 = arith.constant 0 : i32
    %c0_i32_0 = arith.constant 0 : i32
    return %arg0, %c0_i32 : i32, i32
  }
  func.func @transform_1(%arg0: i32) -> (i32, i32) {
    %c0_i32 = arith.constant 0 : i32
    %c0_i32_0 = arith.constant 0 : i32
    %c0_i32_1 = arith.constant 0 : i32
    return %c0_i32, %c0_i32_0 : i32, i32
  }
  func.func @transform_2(%arg0: i32) -> (i32, i32) {
    %c0_i32 = arith.constant 0 : i32
    %c0_i32_0 = arith.constant 0 : i32
    %c0_i32_1 = arith.constant 0 : i32
    return %c0_i32, %c0_i32_0 : i32, i32
  }
  func.func @transform_3(%arg0: i32) -> (i32, i32) {
    %c0_i32 = arith.constant 0 : i32
    %c0_i32_0 = arith.constant 0 : i32
    %c0_i32_1 = arith.constant 0 : i32
    return %c0_i32, %c0_i32_0 : i32, i32
  }
  func.func @transform_4(%arg0: i32) -> (i32, i32) {
    %c0_i32 = arith.constant 0 : i32
    %c0_i32_0 = arith.constant 0 : i32
    %c0_i32_1 = arith.constant 0 : i32
    return %c0_i32, %c0_i32_0 : i32, i32
  }
  func.func @transform_5(%arg0: i32) -> (i32, i32) {
    %c0_i32 = arith.constant 0 : i32
    %c0_i32_0 = arith.constant 0 : i32
    return %arg0, %c0_i32 : i32, i32
  }
}

</mosaic_0001>

<llo_original>
// kernel: cnn_1c_forward.2
$region0: #{cnn_1c_forward.2}
  #allocation0 [shape = 'u32[]', space=smem, size = 0x4, offset = 0x4, fixed_abs, tag = 'smem constant byte address 0x4 - core index']
  #allocation1 [shape = 'u32[72,128]{1,0:T(1,128)}', space=vmem, size = 0x9000, scoped, tag = 'internal scratch']
  %s0 = inlined_call_operand.vmem [shape: f32[9,4096], index: 0, kind: input, shape index: {}]
  %s1 = inlined_call_operand.vmem [shape: f32[32,9], index: 1, kind: input, shape index: {}]
  %s2 = inlined_call_operand.vmem [shape: f32[32,1], index: 2, kind: input, shape index: {}]
  %s3 = inlined_call_operand.vmem [shape: f32[8,32,128], index: 3, kind: output, shape index: {}]
  %s4 = sld [smem:[#allocation0]]
  $region22: #{cnn_1c_forward.2} parent=0
    _
  %s6 = ssub.s32 1, %s4
  %s7 = scalar_select 0, %s6, %s4
  // Predicated region
  $region2: #{cnn_1c_forward.2} parent=0 // pred_check
    _
  $region3: #{cnn_1c_forward.2} parent=0 // pred_check_branch
    %9 = sbr.rel (0) target = $region5
  $region4: #{cnn_1c_forward.2} parent=0 // pred_region
    _
  $region5: #{cnn_1c_forward.2} parent=0 // pred_fallthru
    _
  // Predicated region
  $region6: #{cnn_1c_forward.2} parent=0 // pred_check
    _
  $region7: #{cnn_1c_forward.2} parent=0 // pred_check_branch
    %11 = sbr.rel (0) target = $region9
  $region8: #{cnn_1c_forward.2} parent=0 // pred_region
    _
  $region9: #{cnn_1c_forward.2} parent=0 // pred_fallthru
    _
  // Predicated region
  $region10: #{cnn_1c_forward.2} parent=0 // pred_check
    _
  $region11: #{cnn_1c_forward.2} parent=0 // pred_check_branch
    %13 = sbr.rel (0) target = $region13
  $region12: #{cnn_1c_forward.2} parent=0 // pred_region
    _
  $region13: #{cnn_1c_forward.2} parent=0 // pred_fallthru
    _
  %v14 = vld [vmem:[%s1] sm:$0xff]
  %v15 = vld [vmem:[%s1 + $0x8] sm:$0xff]
  %v16 = vld [vmem:[%s1 + $0x10] sm:$0xff]
  %v17 = vld [vmem:[%s1 + $0x18] sm:$0xff]
  %v18 = vld [vmem:[%s0] sm:$0xff]
  %v19 = vld [vmem:[%s0 + $0x8] sm:$0xff]
  %v20 = vld [vmem:[%s0 + $0x10] sm:$0xff]
  %v21 = vld [vmem:[%s0 + $0x18] sm:$0xff]
  %v22 = vld [vmem:[%s0 + $0x20] sm:$0xff]
  %v23 = vld [vmem:[%s0 + $0x28] sm:$0xff]
  %v24 = vld [vmem:[%s0 + $0x30] sm:$0xff]
  %v25 = vld [vmem:[%s0 + $0x38] sm:$0xff]
  %v26 = vld [vmem:[%s0 + $0x40] sm:$0xff]
  %v27 = vld [vmem:[%s0 + $0x48] sm:$0xff]
  %v28 = vld [vmem:[%s0 + $0x50] sm:$0xff]
  %v29 = vld [vmem:[%s0 + $0x58] sm:$0xff]
  %v30 = vld [vmem:[%s0 + $0x60] sm:$0xff]
  %v31 = vld [vmem:[%s0 + $0x68] sm:$0xff]
  %v32 = vld [vmem:[%s0 + $0x70] sm:$0xff]
  %v33 = vld [vmem:[%s0 + $0x78] sm:$0xff]
  %v34 = vld [vmem:[%s0 + $0x80] sm:$0xff]
  %v35 = vld [vmem:[%s0 + $0x88] sm:$0xff]
  %v36 = vld [vmem:[%s0 + $0x90] sm:$0xff]
  %v37 = vld [vmem:[%s0 + $0x98] sm:$0xff]
  %v38 = vld [vmem:[%s0 + $0xa0] sm:$0xff]
  %v39 = vld [vmem:[%s0 + $0xa8] sm:$0xff]
  %v40 = vld [vmem:[%s0 + $0xb0] sm:$0xff]
  %v41 = vld [vmem:[%s0 + $0xb8] sm:$0xff]
  %v42 = vld [vmem:[%s0 + $0xc0] sm:$0xff]
  %v43 = vld [vmem:[%s0 + $0xc8] sm:$0xff]
  %v44 = vld [vmem:[%s0 + $0xd0] sm:$0xff]
  %v45 = vld [vmem:[%s0 + $0xd8] sm:$0xff]
  %v46 = vld [vmem:[%s0 + $0xe0] sm:$0xff]
  %v47 = vld [vmem:[%s0 + $0xe8] sm:$0xff]
  %v48 = vld [vmem:[%s0 + $0xf0] sm:$0xff]
  %v49 = vld [vmem:[%s0 + $0xf8] sm:$0xff]
  %v50 = vld [vmem:[%s0 + $0x100] sm:$0x1]
  %v51 = vld [vmem:[%s0 + $0x108] sm:$0x1]
  %v52 = vld [vmem:[%s0 + $0x110] sm:$0x1]
  %v53 = vld [vmem:[%s0 + $0x118] sm:$0x1]
  %v54 = vld [vmem:[%s0 + $0x120] sm:$0x1]
  %v55 = vld [vmem:[%s0 + $0x128] sm:$0x1]
  %v56 = vld [vmem:[%s0 + $0x130] sm:$0x1]
  %v57 = vld [vmem:[%s0 + $0x138] sm:$0x1]
  %v58 = vld [vmem:[%s0 + $0x140] sm:$0x1]
  %v59 = vld [vmem:[%s0 + $0x148] sm:$0x1]
  %v60 = vld [vmem:[%s0 + $0x150] sm:$0x1]
  %v61 = vld [vmem:[%s0 + $0x158] sm:$0x1]
  %v62 = vld [vmem:[%s0 + $0x160] sm:$0x1]
  %v63 = vld [vmem:[%s0 + $0x168] sm:$0x1]
  %v64 = vld [vmem:[%s0 + $0x170] sm:$0x1]
  %v65 = vld [vmem:[%s0 + $0x178] sm:$0x1]
  %v66 = vld [vmem:[%s0 + $0x180] sm:$0x1]
  %v67 = vld [vmem:[%s0 + $0x188] sm:$0x1]
  %v68 = vld [vmem:[%s0 + $0x190] sm:$0x1]
  %v69 = vld [vmem:[%s0 + $0x198] sm:$0x1]
  %v70 = vld [vmem:[%s0 + $0x1a0] sm:$0x1]
  %v71 = vld [vmem:[%s0 + $0x1a8] sm:$0x1]
  %v72 = vld [vmem:[%s0 + $0x1b0] sm:$0x1]
  %v73 = vld [vmem:[%s0 + $0x1b8] sm:$0x1]
  %v74 = vld [vmem:[%s0 + $0x1c0] sm:$0x1]
  %v75 = vld [vmem:[%s0 + $0x1c8] sm:$0x1]
  %v76 = vld [vmem:[%s0 + $0x1d0] sm:$0x1]
  %v77 = vld [vmem:[%s0 + $0x1d8] sm:$0x1]
  %v78 = vld [vmem:[%s0 + $0x1e0] sm:$0x1]
  %v79 = vld [vmem:[%s0 + $0x1e8] sm:$0x1]
  %v80 = vld [vmem:[%s0 + $0x1f0] sm:$0x1]
  %v81 = vld [vmem:[%s0 + $0x1f8] sm:$0x1]
  %vm82 = vcmask 72704
  %v84 = vsel %vm82, %v14, 0
  %v87 = vsel %vm82, %v15, 0
  %v90 = vsel %vm82, %v16, 0
  %v93 = vsel %vm82, %v17, 0
  %vm95 = vcmask 1040384
  %v97 = vsel %vm95, %v50, 0
  %v100 = vsel %vm95, %v51, 0
  %v103 = vsel %vm95, %v52, 0
  %v106 = vsel %vm95, %v53, 0
  %v109 = vsel %vm95, %v54, 0
  %v112 = vsel %vm95, %v55, 0
  %v115 = vsel %vm95, %v56, 0
  %v118 = vsel %vm95, %v57, 0
  %v121 = vsel %vm95, %v58, 0
  %v124 = vsel %vm95, %v59, 0
  %v127 = vsel %vm95, %v60, 0
  %v130 = vsel %vm95, %v61, 0
  %v133 = vsel %vm95, %v62, 0
  %v136 = vsel %vm95, %v63, 0
  %v139 = vsel %vm95, %v64, 0
  %v142 = vsel %vm95, %v65, 0
  %v145 = vsel %vm95, %v66, 0
  %v148 = vsel %vm95, %v67, 0
  %v151 = vsel %vm95, %v68, 0
  %v154 = vsel %vm95, %v69, 0
  %v157 = vsel %vm95, %v70, 0
  %v160 = vsel %vm95, %v71, 0
  %v163 = vsel %vm95, %v72, 0
  %v166 = vsel %vm95, %v73, 0
  %v169 = vsel %vm95, %v74, 0
  %v172 = vsel %vm95, %v75, 0
  %v175 = vsel %vm95, %v76, 0
  %v178 = vsel %vm95, %v77, 0
  %v181 = vsel %vm95, %v78, 0
  %v184 = vsel %vm95, %v79, 0
  %v187 = vsel %vm95, %v80, 0
  %v190 = vsel %vm95, %v81, 0
  %192 = vmatpush.msra.mxu0 0.0
  %193 = vmatpush.msra.mxu0 0.0
  %194 = vmatpush.msra.mxu0 0.0
  %195 = vmatpush.msra.mxu0 0.0
  %196 = vmatpush.msra.mxu0 0.0
  %197 = vmatpush.msra.mxu0 0.0
  %198 = vmatpush.msra.mxu0 0.0
  %199 = vmatpush.msra.mxu0 0.0
  %200 = vmatpush.msra.mxu0 0.0
  %201 = vmatpush.msra.mxu0 0.0
  %202 = vmatpush.msra.mxu0 0.0
  %203 = vmatpush.msra.mxu0 0.0
  %204 = vmatpush.msra.mxu0 0.0
  %205 = vmatpush.msra.mxu0 0.0
  %206 = vmatpush.msra.mxu0 %v97
  %207 = vmatpush.msra.mxu0 %v18
  %208 = vmatmul.f32.gmra.mxu0 %v84
  %v209 = vpop.f32.mrf.mxu0
  %v210 = vadd.f32 0.0, %v209
  %211 = vmatmul.f32.gmra.mxu0 %v87
  %v212 = vpop.f32.mrf.mxu0
  %v213 = vadd.f32 0.0, %v212
  %214 = vmatmul.f32.gmra.mxu0 %v90
  %v215 = vpop.f32.mrf.mxu0
  %v216 = vadd.f32 0.0, %v215
  %217 = vmatmul.f32.gmra.mxu0 %v93
  %v218 = vpop.f32.mrf.mxu0
  %v219 = vadd.f32 0.0, %v218
  %220 = vdwg.mxu0
  %221 = vmatpush.msra.mxu0 0.0
  %222 = vmatpush.msra.mxu0 0.0
  %223 = vmatpush.msra.mxu0 0.0
  %224 = vmatpush.msra.mxu0 0.0
  %225 = vmatpush.msra.mxu0 0.0
  %226 = vmatpush.msra.mxu0 0.0
  %227 = vmatpush.msra.mxu0 0.0
  %228 = vmatpush.msra.mxu0 0.0
  %229 = vmatpush.msra.mxu0 0.0
  %230 = vmatpush.msra.mxu0 0.0
  %231 = vmatpush.msra.mxu0 0.0
  %232 = vmatpush.msra.mxu0 0.0
  %233 = vmatpush.msra.mxu0 0.0
  %234 = vmatpush.msra.mxu0 0.0
  %235 = vmatpush.msra.mxu0 %v100
  %236 = vmatpush.msra.mxu0 %v19
  %237 = vmatmul.f32.gmra.mxu0 %v84
  %v238 = vpop.f32.mrf.mxu0
  %v239 = vadd.f32 0.0, %v238
  %240 = vmatmul.f32.gmra.mxu0 %v87
  %v241 = vpop.f32.mrf.mxu0
  %v242 = vadd.f32 0.0, %v241
  %243 = vmatmul.f32.gmra.mxu0 %v90
  %v244 = vpop.f32.mrf.mxu0
  %v245 = vadd.f32 0.0, %v244
  %246 = vmatmul.f32.gmra.mxu0 %v93
  %v247 = vpop.f32.mrf.mxu0
  %v248 = vadd.f32 0.0, %v247
  %249 = vdwg.mxu0
  %250 = vmatpush.msra.mxu0 0.0
  %251 = vmatpush.msra.mxu0 0.0
  %252 = vmatpush.msra.mxu0 0.0
  %253 = vmatpush.msra.mxu0 0.0
  %254 = vmatpush.msra.mxu0 0.0
  %255 = vmatpush.msra.mxu0 0.0
  %256 = vmatpush.msra.mxu0 0.0
  %257 = vmatpush.msra.mxu0 0.0
  %258 = vmatpush.msra.mxu0 0.0
  %259 = vmatpush.msra.mxu0 0.0
  %260 = vmatpush.msra.mxu0 0.0
  %261 = vmatpush.msra.mxu0 0.0
  %262 = vmatpush.msra.mxu0 0.0
  %263 = vmatpush.msra.mxu0 0.0
  %264 = vmatpush.msra.mxu0 %v103
  %265 = vmatpush.msra.mxu0 %v20
  %266 = vmatmul.f32.gmra.mxu0 %v84
  %v267 = vpop.f32.mrf.mxu0
  %v268 = vadd.f32 0.0, %v267
  %269 = vmatmul.f32.gmra.mxu0 %v87
  %v270 = vpop.f32.mrf.mxu0
  %v271 = vadd.f32 0.0, %v270
  %272 = vmatmul.f32.gmra.mxu0 %v90
  %v273 = vpop.f32.mrf.mxu0
  %v274 = vadd.f32 0.0, %v273
  %275 = vmatmul.f32.gmra.mxu0 %v93
  %v276 = vpop.f32.mrf.mxu0
  %v277 = vadd.f32 0.0, %v276
  %278 = vdwg.mxu0
  %279 = vmatpush.msra.mxu0 0.0
  %280 = vmatpush.msra.mxu0 0.0
  %281 = vmatpush.msra.mxu0 0.0
  %282 = vmatpush.msra.mxu0 0.0
  %283 = vmatpush.msra.mxu0 0.0
  %284 = vmatpush.msra.mxu0 0.0
  %285 = vmatpush.msra.mxu0 0.0
  %286 = vmatpush.msra.mxu0 0.0
  %287 = vmatpush.msra.mxu0 0.0
  %288 = vmatpush.msra.mxu0 0.0
  %289 = vmatpush.msra.mxu0 0.0
  %290 = vmatpush.msra.mxu0 0.0
  %291 = vmatpush.msra.mxu0 0.0
  %292 = vmatpush.msra.mxu0 0.0
  %293 = vmatpush.msra.mxu0 %v106
  %294 = vmatpush.msra.mxu0 %v21
  %295 = vmatmul.f32.gmra.mxu0 %v84
  %v296 = vpop.f32.mrf.mxu0
  %v297 = vadd.f32 0.0, %v296
  %298 = vmatmul.f32.gmra.mxu0 %v87
  %v299 = vpop.f32.mrf.mxu0
  %v300 = vadd.f32 0.0, %v299
  %301 = vmatmul.f32.gmra.mxu0 %v90
  %v302 = vpop.f32.mrf.mxu0
  %v303 = vadd.f32 0.0, %v302
  %304 = vmatmul.f32.gmra.mxu0 %v93
  %v305 = vpop.f32.mrf.mxu0
  %v306 = vadd.f32 0.0, %v305
  %307 = vdwg.mxu0
  %308 = vmatpush.msra.mxu0 0.0
  %309 = vmatpush.msra.mxu0 0.0
  %310 = vmatpush.msra.mxu0 0.0
  %311 = vmatpush.msra.mxu0 0.0
  %312 = vmatpush.msra.mxu0 0.0
  %313 = vmatpush.msra.mxu0 0.0
  %314 = vmatpush.msra.mxu0 0.0
  %315 = vmatpush.msra.mxu0 0.0
  %316 = vmatpush.msra.mxu0 0.0
  %317 = vmatpush.msra.mxu0 0.0
  %318 = vmatpush.msra.mxu0 0.0
  %319 = vmatpush.msra.mxu0 0.0
  %320 = vmatpush.msra.mxu0 0.0
  %321 = vmatpush.msra.mxu0 0.0
  %322 = vmatpush.msra.mxu0 %v109
  %323 = vmatpush.msra.mxu0 %v22
  %324 = vmatmul.f32.gmra.mxu0 %v84
  %v325 = vpop.f32.mrf.mxu0
  %v326 = vadd.f32 0.0, %v325
  %327 = vmatmul.f32.gmra.mxu0 %v87
  %v328 = vpop.f32.mrf.mxu0
  %v329 = vadd.f32 0.0, %v328
  %330 = vmatmul.f32.gmra.mxu0 %v90
  %v331 = vpop.f32.mrf.mxu0
  %v332 = vadd.f32 0.0, %v331
  %333 = vmatmul.f32.gmra.mxu0 %v93
  %v334 = vpop.f32.mrf.mxu0
  %v335 = vadd.f32 0.0, %v334
  %336 = vdwg.mxu0
  %337 = vmatpush.msra.mxu0 0.0
  %338 = vmatpush.msra.mxu0 0.0
  %339 = vmatpush.msra.mxu0 0.0
  %340 = vmatpush.msra.mxu0 0.0
  %341 = vmatpush.msra.mxu0 0.0
  %342 = vmatpush.msra.mxu0 0.0
  %343 = vmatpush.msra.mxu0 0.0
  %344 = vmatpush.msra.mxu0 0.0
  %345 = vmatpush.msra.mxu0 0.0
  %346 = vmatpush.msra.mxu0 0.0
  %347 = vmatpush.msra.mxu0 0.0
  %348 = vmatpush.msra.mxu0 0.0
  %349 = vmatpush.msra.mxu0 0.0
  %350 = vmatpush.msra.mxu0 0.0
  %351 = vmatpush.msra.mxu0 %v112
  %352 = vmatpush.msra.mxu0 %v23
  %353 = vmatmul.f32.gmra.mxu0 %v84
  %v354 = vpop.f32.mrf.mxu0
  %v355 = vadd.f32 0.0, %v354
  %356 = vmatmul.f32.gmra.mxu0 %v87
  %v357 = vpop.f32.mrf.mxu0
  %v358 = vadd.f32 0.0, %v357
  %359 = vmatmul.f32.gmra.mxu0 %v90
  %v360 = vpop.f32.mrf.mxu0
  %v361 = vadd.f32 0.0, %v360
  %362 = vmatmul.f32.gmra.mxu0 %v93
  %v363 = vpop.f32.mrf.mxu0
  %v364 = vadd.f32 0.0, %v363
  %365 = vdwg.mxu0
  %366 = vmatpush.msra.mxu0 0.0
  %367 = vmatpush.msra.mxu0 0.0
  %368 = vmatpush.msra.mxu0 0.0
  %369 = vmatpush.msra.mxu0 0.0
  %370 = vmatpush.msra.mxu0 0.0
  %371 = vmatpush.msra.mxu0 0.0
  %372 = vmatpush.msra.mxu0 0.0
  %373 = vmatpush.msra.mxu0 0.0
  %374 = vmatpush.msra.mxu0 0.0
  %375 = vmatpush.msra.mxu0 0.0
  %376 = vmatpush.msra.mxu0 0.0
  %377 = vmatpush.msra.mxu0 0.0
  %378 = vmatpush.msra.mxu0 0.0
  %379 = vmatpush.msra.mxu0 0.0
  %380 = vmatpush.msra.mxu0 %v115
  %381 = vmatpush.msra.mxu0 %v24
  %382 = vmatmul.f32.gmra.mxu0 %v84
  %v383 = vpop.f32.mrf.mxu0
  %v384 = vadd.f32 0.0, %v383
  %385 = vmatmul.f32.gmra.mxu0 %v87
  %v386 = vpop.f32.mrf.mxu0
  %v387 = vadd.f32 0.0, %v386
  %388 = vmatmul.f32.gmra.mxu0 %v90
  %v389 = vpop.f32.mrf.mxu0
  %v390 = vadd.f32 0.0, %v389
  %391 = vmatmul.f32.gmra.mxu0 %v93
  %v392 = vpop.f32.mrf.mxu0
  %v393 = vadd.f32 0.0, %v392
  %394 = vdwg.mxu0
  %395 = vmatpush.msra.mxu0 0.0
  %396 = vmatpush.msra.mxu0 0.0
  %397 = vmatpush.msra.mxu0 0.0
  %398 = vmatpush.msra.mxu0 0.0
  %399 = vmatpush.msra.mxu0 0.0
  %400 = vmatpush.msra.mxu0 0.0
  %401 = vmatpush.msra.mxu0 0.0
  %402 = vmatpush.msra.mxu0 0.0
  %403 = vmatpush.msra.mxu0 0.0
  %404 = vmatpush.msra.mxu0 0.0
  %405 = vmatpush.msra.mxu0 0.0
  %406 = vmatpush.msra.mxu0 0.0
  %407 = vmatpush.msra.mxu0 0.0
  %408 = vmatpush.msra.mxu0 0.0
  %409 = vmatpush.msra.mxu0 %v118
  %410 = vmatpush.msra.mxu0 %v25
  %411 = vmatmul.f32.gmra.mxu0 %v84
  %v412 = vpop.f32.mrf.mxu0
  %v413 = vadd.f32 0.0, %v412
  %414 = vmatmul.f32.gmra.mxu0 %v87
  %v415 = vpop.f32.mrf.mxu0
  %v416 = vadd.f32 0.0, %v415
  %417 = vmatmul.f32.gmra.mxu0 %v90
  %v418 = vpop.f32.mrf.mxu0
  %v419 = vadd.f32 0.0, %v418
  %420 = vmatmul.f32.gmra.mxu0 %v93
  %v421 = vpop.f32.mrf.mxu0
  %v422 = vadd.f32 0.0, %v421
  %423 = vdwg.mxu0
  %424 = vmatpush.msra.mxu0 0.0
  %425 = vmatpush.msra.mxu0 0.0
  %426 = vmatpush.msra.mxu0 0.0
  %427 = vmatpush.msra.mxu0 0.0
  %428 = vmatpush.msra.mxu0 0.0
  %429 = vmatpush.msra.mxu0 0.0
  %430 = vmatpush.msra.mxu0 0.0
  %431 = vmatpush.msra.mxu0 0.0
  %432 = vmatpush.msra.mxu0 0.0
  %433 = vmatpush.msra.mxu0 0.0
  %434 = vmatpush.msra.mxu0 0.0
  %435 = vmatpush.msra.mxu0 0.0
  %436 = vmatpush.msra.mxu0 0.0
  %437 = vmatpush.msra.mxu0 0.0
  %438 = vmatpush.msra.mxu0 %v121
  %439 = vmatpush.msra.mxu0 %v26
  %440 = vmatmul.f32.gmra.mxu0 %v84
  %v441 = vpop.f32.mrf.mxu0
  %v442 = vadd.f32 0.0, %v441
  %443 = vmatmul.f32.gmra.mxu0 %v87
  %v444 = vpop.f32.mrf.mxu0
  %v445 = vadd.f32 0.0, %v444
  %446 = vmatmul.f32.gmra.mxu0 %v90
  %v447 = vpop.f32.mrf.mxu0
  %v448 = vadd.f32 0.0, %v447
  %449 = vmatmul.f32.gmra.mxu0 %v93
  %v450 = vpop.f32.mrf.mxu0
  %v451 = vadd.f32 0.0, %v450
  %452 = vdwg.mxu0
  %453 = vmatpush.msra.mxu0 0.0
  %454 = vmatpush.msra.mxu0 0.0
  %455 = vmatpush.msra.mxu0 0.0
  %456 = vmatpush.msra.mxu0 0.0
  %457 = vmatpush.msra.mxu0 0.0
  %458 = vmatpush.msra.mxu0 0.0
  %459 = vmatpush.msra.mxu0 0.0
  %460 = vmatpush.msra.mxu0 0.0
  %461 = vmatpush.msra.mxu0 0.0
  %462 = vmatpush.msra.mxu0 0.0
  %463 = vmatpush.msra.mxu0 0.0
  %464 = vmatpush.msra.mxu0 0.0
  %465 = vmatpush.msra.mxu0 0.0
  %466 = vmatpush.msra.mxu0 0.0
  %467 = vmatpush.msra.mxu0 %v124
  %468 = vmatpush.msra.mxu0 %v27
  %469 = vmatmul.f32.gmra.mxu0 %v84
  %v470 = vpop.f32.mrf.mxu0
  %v471 = vadd.f32 0.0, %v470
  %472 = vmatmul.f32.gmra.mxu0 %v87
  %v473 = vpop.f32.mrf.mxu0
  %v474 = vadd.f32 0.0, %v473
  %475 = vmatmul.f32.gmra.mxu0 %v90
  %v476 = vpop.f32.mrf.mxu0
  %v477 = vadd.f32 0.0, %v476
  %478 = vmatmul.f32.gmra.mxu0 %v93
  %v479 = vpop.f32.mrf.mxu0
  %v480 = vadd.f32 0.0, %v479
  %481 = vdwg.mxu0
  %482 = vmatpush.msra.mxu0 0.0
  %483 = vmatpush.msra.mxu0 0.0
  %484 = vmatpush.msra.mxu0 0.0
  %485 = vmatpush.msra.mxu0 0.0
  %486 = vmatpush.msra.mxu0 0.0
  %487 = vmatpush.msra.mxu0 0.0
  %488 = vmatpush.msra.mxu0 0.0
  %489 = vmatpush.msra.mxu0 0.0
  %490 = vmatpush.msra.mxu0 0.0
  %491 = vmatpush.msra.mxu0 0.0
  %492 = vmatpush.msra.mxu0 0.0
  %493 = vmatpush.msra.mxu0 0.0
  %494 = vmatpush.msra.mxu0 0.0
  %495 = vmatpush.msra.mxu0 0.0
  %496 = vmatpush.msra.mxu0 %v127
  %497 = vmatpush.msra.mxu0 %v28
  %498 = vmatmul.f32.gmra.mxu0 %v84
  %v499 = vpop.f32.mrf.mxu0
  %v500 = vadd.f32 0.0, %v499
  %501 = vmatmul.f32.gmra.mxu0 %v87
  %v502 = vpop.f32.mrf.mxu0
  %v503 = vadd.f32 0.0, %v502
  %504 = vmatmul.f32.gmra.mxu0 %v90
  %v505 = vpop.f32.mrf.mxu0
  %v506 = vadd.f32 0.0, %v505
  %507 = vmatmul.f32.gmra.mxu0 %v93
  %v508 = vpop.f32.mrf.mxu0
  %v509 = vadd.f32 0.0, %v508
  %510 = vdwg.mxu0
  %511 = vmatpush.msra.mxu0 0.0
  %512 = vmatpush.msra.mxu0 0.0
  %513 = vmatpush.msra.mxu0 0.0
  %514 = vmatpush.msra.mxu0 0.0
  %515 = vmatpush.msra.mxu0 0.0
  %516 = vmatpush.msra.mxu0 0.0
  %517 = vmatpush.msra.mxu0 0.0
  %518 = vmatpush.msra.mxu0 0.0
  %519 = vmatpush.msra.mxu0 0.0
  %520 = vmatpush.msra.mxu0 0.0
  %521 = vmatpush.msra.mxu0 0.0
  %522 = vmatpush.msra.mxu0 0.0
  %523 = vmatpush.msra.mxu0 0.0
  %524 = vmatpush.msra.mxu0 0.0
  %525 = vmatpush.msra.mxu0 %v130
  %526 = vmatpush.msra.mxu0 %v29
  %527 = vmatmul.f32.gmra.mxu0 %v84
  %v528 = vpop.f32.mrf.mxu0
  %v529 = vadd.f32 0.0, %v528
  %530 = vmatmul.f32.gmra.mxu0 %v87
  %v531 = vpop.f32.mrf.mxu0
  %v532 = vadd.f32 0.0, %v531
  %533 = vmatmul.f32.gmra.mxu0 %v90
  %v534 = vpop.f32.mrf.mxu0
  %v535 = vadd.f32 0.0, %v534
  %536 = vmatmul.f32.gmra.mxu0 %v93
  %v537 = vpop.f32.mrf.mxu0
  %v538 = vadd.f32 0.0, %v537
  %539 = vdwg.mxu0
  %540 = vmatpush.msra.mxu0 0.0
  %541 = vmatpush.msra.mxu0 0.0
  %542 = vmatpush.msra.mxu0 0.0
  %543 = vmatpush.msra.mxu0 0.0
  %544 = vmatpush.msra.mxu0 0.0
  %545 = vmatpush.msra.mxu0 0.0
  %546 = vmatpush.msra.mxu0 0.0
  %547 = vmatpush.msra.mxu0 0.0
  %548 = vmatpush.msra.mxu0 0.0
  %549 = vmatpush.msra.mxu0 0.0
  %550 = vmatpush.msra.mxu0 0.0
  %551 = vmatpush.msra.mxu0 0.0
  %552 = vmatpush.msra.mxu0 0.0
  %553 = vmatpush.msra.mxu0 0.0
  %554 = vmatpush.msra.mxu0 %v133
  %555 = vmatpush.msra.mxu0 %v30
  %556 = vmatmul.f32.gmra.mxu0 %v84
  %v557 = vpop.f32.mrf.mxu0
  %v558 = vadd.f32 0.0, %v557
  %559 = vmatmul.f32.gmra.mxu0 %v87
  %v560 = vpop.f32.mrf.mxu0
  %v561 = vadd.f32 0.0, %v560
  %562 = vmatmul.f32.gmra.mxu0 %v90
  %v563 = vpop.f32.mrf.mxu0
  %v564 = vadd.f32 0.0, %v563
  %565 = vmatmul.f32.gmra.mxu0 %v93
  %v566 = vpop.f32.mrf.mxu0
  %v567 = vadd.f32 0.0, %v566
  %568 = vdwg.mxu0
  %569 = vmatpush.msra.mxu0 0.0
  %570 = vmatpush.msra.mxu0 0.0
  %571 = vmatpush.msra.mxu0 0.0
  %572 = vmatpush.msra.mxu0 0.0
  %573 = vmatpush.msra.mxu0 0.0
  %574 = vmatpush.msra.mxu0 0.0
  %575 = vmatpush.msra.mxu0 0.0
  %576 = vmatpush.msra.mxu0 0.0
  %577 = vmatpush.msra.mxu0 0.0
  %578 = vmatpush.msra.mxu0 0.0
  %579 = vmatpush.msra.mxu0 0.0
  %580 = vmatpush.msra.mxu0 0.0
  %581 = vmatpush.msra.mxu0 0.0
  %582 = vmatpush.msra.mxu0 0.0
  %583 = vmatpush.msra.mxu0 %v136
  %584 = vmatpush.msra.mxu0 %v31
  %585 = vmatmul.f32.gmra.mxu0 %v84
  %v586 = vpop.f32.mrf.mxu0
  %v587 = vadd.f32 0.0, %v586
  %588 = vmatmul.f32.gmra.mxu0 %v87
  %v589 = vpop.f32.mrf.mxu0
  %v590 = vadd.f32 0.0, %v589
  %591 = vmatmul.f32.gmra.mxu0 %v90
  %v592 = vpop.f32.mrf.mxu0
  %v593 = vadd.f32 0.0, %v592
  %594 = vmatmul.f32.gmra.mxu0 %v93
  %v595 = vpop.f32.mrf.mxu0
  %v596 = vadd.f32 0.0, %v595
  %597 = vdwg.mxu0
  %598 = vmatpush.msra.mxu0 0.0
  %599 = vmatpush.msra.mxu0 0.0
  %600 = vmatpush.msra.mxu0 0.0
  %601 = vmatpush.msra.mxu0 0.0
  %602 = vmatpush.msra.mxu0 0.0
  %603 = vmatpush.msra.mxu0 0.0
  %604 = vmatpush.msra.mxu0 0.0
  %605 = vmatpush.msra.mxu0 0.0
  %606 = vmatpush.msra.mxu0 0.0
  %607 = vmatpush.msra.mxu0 0.0
  %608 = vmatpush.msra.mxu0 0.0
  %609 = vmatpush.msra.mxu0 0.0
  %610 = vmatpush.msra.mxu0 0.0
  %611 = vmatpush.msra.mxu0 0.0
  %612 = vmatpush.msra.mxu0 %v139
  %613 = vmatpush.msra.mxu0 %v32
  %614 = vmatmul.f32.gmra.mxu0 %v84
  %v615 = vpop.f32.mrf.mxu0
  %v616 = vadd.f32 0.0, %v615
  %617 = vmatmul.f32.gmra.mxu0 %v87
  %v618 = vpop.f32.mrf.mxu0
  %v619 = vadd.f32 0.0, %v618
  %620 = vmatmul.f32.gmra.mxu0 %v90
  %v621 = vpop.f32.mrf.mxu0
  %v622 = vadd.f32 0.0, %v621
  %623 = vmatmul.f32.gmra.mxu0 %v93
  %v624 = vpop.f32.mrf.mxu0
  %v625 = vadd.f32 0.0, %v624
  %626 = vdwg.mxu0
  %627 = vmatpush.msra.mxu0 0.0
  %628 = vmatpush.msra.mxu0 0.0
  %629 = vmatpush.msra.mxu0 0.0
  %630 = vmatpush.msra.mxu0 0.0
  %631 = vmatpush.msra.mxu0 0.0
  %632 = vmatpush.msra.mxu0 0.0
  %633 = vmatpush.msra.mxu0 0.0
  %634 = vmatpush.msra.mxu0 0.0
  %635 = vmatpush.msra.mxu0 0.0
  %636 = vmatpush.msra.mxu0 0.0
  %637 = vmatpush.msra.mxu0 0.0
  %638 = vmatpush.msra.mxu0 0.0
  %639 = vmatpush.msra.mxu0 0.0
  %640 = vmatpush.msra.mxu0 0.0
  %641 = vmatpush.msra.mxu0 %v142
  %642 = vmatpush.msra.mxu0 %v33
  %643 = vmatmul.f32.gmra.mxu0 %v84
  %v644 = vpop.f32.mrf.mxu0
  %v645 = vadd.f32 0.0, %v644
  %646 = vmatmul.f32.gmra.mxu0 %v87
  %v647 = vpop.f32.mrf.mxu0
  %v648 = vadd.f32 0.0, %v647
  %649 = vmatmul.f32.gmra.mxu0 %v90
  %v650 = vpop.f32.mrf.mxu0
  %v651 = vadd.f32 0.0, %v650
  %652 = vmatmul.f32.gmra.mxu0 %v93
  %v653 = vpop.f32.mrf.mxu0
  %v654 = vadd.f32 0.0, %v653
  %655 = vdwg.mxu0
  %656 = vmatpush.msra.mxu0 0.0
  %657 = vmatpush.msra.mxu0 0.0
  %658 = vmatpush.msra.mxu0 0.0
  %659 = vmatpush.msra.mxu0 0.0
  %660 = vmatpush.msra.mxu0 0.0
  %661 = vmatpush.msra.mxu0 0.0
  %662 = vmatpush.msra.mxu0 0.0
  %663 = vmatpush.msra.mxu0 0.0
  %664 = vmatpush.msra.mxu0 0.0
  %665 = vmatpush.msra.mxu0 0.0
  %666 = vmatpush.msra.mxu0 0.0
  %667 = vmatpush.msra.mxu0 0.0
  %668 = vmatpush.msra.mxu0 0.0
  %669 = vmatpush.msra.mxu0 0.0
  %670 = vmatpush.msra.mxu0 %v145
  %671 = vmatpush.msra.mxu0 %v34
  %672 = vmatmul.f32.gmra.mxu0 %v84
  %v673 = vpop.f32.mrf.mxu0
  %v674 = vadd.f32 0.0, %v673
  %675 = vmatmul.f32.gmra.mxu0 %v87
  %v676 = vpop.f32.mrf.mxu0
  %v677 = vadd.f32 0.0, %v676
  %678 = vmatmul.f32.gmra.mxu0 %v90
  %v679 = vpop.f32.mrf.mxu0
  %v680 = vadd.f32 0.0, %v679
  %681 = vmatmul.f32.gmra.mxu0 %v93
  %v682 = vpop.f32.mrf.mxu0
  %v683 = vadd.f32 0.0, %v682
  %684 = vdwg.mxu0
  %685 = vmatpush.msra.mxu0 0.0
  %686 = vmatpush.msra.mxu0 0.0
  %687 = vmatpush.msra.mxu0 0.0
  %688 = vmatpush.msra.mxu0 0.0
  %689 = vmatpush.msra.mxu0 0.0
  %690 = vmatpush.msra.mxu0 0.0
  %691 = vmatpush.msra.mxu0 0.0
  %692 = vmatpush.msra.mxu0 0.0
  %693 = vmatpush.msra.mxu0 0.0
  %694 = vmatpush.msra.mxu0 0.0
  %695 = vmatpush.msra.mxu0 0.0
  %696 = vmatpush.msra.mxu0 0.0
  %697 = vmatpush.msra.mxu0 0.0
  %698 = vmatpush.msra.mxu0 0.0
  %699 = vmatpush.msra.mxu0 %v148
  %700 = vmatpush.msra.mxu0 %v35
  %701 = vmatmul.f32.gmra.mxu0 %v84
  %v702 = vpop.f32.mrf.mxu0
  %v703 = vadd.f32 0.0, %v702
  %704 = vmatmul.f32.gmra.mxu0 %v87
  %v705 = vpop.f32.mrf.mxu0
  %v706 = vadd.f32 0.0, %v705
  %707 = vmatmul.f32.gmra.mxu0 %v90
  %v708 = vpop.f32.mrf.mxu0
  %v709 = vadd.f32 0.0, %v708
  %710 = vmatmul.f32.gmra.mxu0 %v93
  %v711 = vpop.f32.mrf.mxu0
  %v712 = vadd.f32 0.0, %v711
  %713 = vdwg.mxu0
  %714 = vmatpush.msra.mxu0 0.0
  %715 = vmatpush.msra.mxu0 0.0
  %716 = vmatpush.msra.mxu0 0.0
  %717 = vmatpush.msra.mxu0 0.0
  %718 = vmatpush.msra.mxu0 0.0
  %719 = vmatpush.msra.mxu0 0.0
  %720 = vmatpush.msra.mxu0 0.0
  %721 = vmatpush.msra.mxu0 0.0
  %722 = vmatpush.msra.mxu0 0.0
  %723 = vmatpush.msra.mxu0 0.0
  %724 = vmatpush.msra.mxu0 0.0
  %725 = vmatpush.msra.mxu0 0.0
  %726 = vmatpush.msra.mxu0 0.0
  %727 = vmatpush.msra.mxu0 0.0
  %728 = vmatpush.msra.mxu0 %v151
  %729 = vmatpush.msra.mxu0 %v36
  %730 = vmatmul.f32.gmra.mxu0 %v84
  %v731 = vpop.f32.mrf.mxu0
  %v732 = vadd.f32 0.0, %v731
  %733 = vmatmul.f32.gmra.mxu0 %v87
  %v734 = vpop.f32.mrf.mxu0
  %v735 = vadd.f32 0.0, %v734
  %736 = vmatmul.f32.gmra.mxu0 %v90
  %v737 = vpop.f32.mrf.mxu0
  %v738 = vadd.f32 0.0, %v737
  %739 = vmatmul.f32.gmra.mxu0 %v93
  %v740 = vpop.f32.mrf.mxu0
  %v741 = vadd.f32 0.0, %v740
  %742 = vdwg.mxu0
  %743 = vmatpush.msra.mxu0 0.0
  %744 = vmatpush.msra.mxu0 0.0
  %745 = vmatpush.msra.mxu0 0.0
  %746 = vmatpush.msra.mxu0 0.0
  %747 = vmatpush.msra.mxu0 0.0
  %748 = vmatpush.msra.mxu0 0.0
  %749 = vmatpush.msra.mxu0 0.0
  %750 = vmatpush.msra.mxu0 0.0
  %751 = vmatpush.msra.mxu0 0.0
  %752 = vmatpush.msra.mxu0 0.0
  %753 = vmatpush.msra.mxu0 0.0
  %754 = vmatpush.msra.mxu0 0.0
  %755 = vmatpush.msra.mxu0 0.0
  %756 = vmatpush.msra.mxu0 0.0
  %757 = vmatpush.msra.mxu0 %v154
  %758 = vmatpush.msra.mxu0 %v37
  %759 = vmatmul.f32.gmra.mxu0 %v84
  %v760 = vpop.f32.mrf.mxu0
  %v761 = vadd.f32 0.0, %v760
  %762 = vmatmul.f32.gmra.mxu0 %v87
  %v763 = vpop.f32.mrf.mxu0
  %v764 = vadd.f32 0.0, %v763
  %765 = vmatmul.f32.gmra.mxu0 %v90
  %v766 = vpop.f32.mrf.mxu0
  %v767 = vadd.f32 0.0, %v766
  %768 = vmatmul.f32.gmra.mxu0 %v93
  %v769 = vpop.f32.mrf.mxu0
  %v770 = vadd.f32 0.0, %v769
  %771 = vdwg.mxu0
  %772 = vmatpush.msra.mxu0 0.0
  %773 = vmatpush.msra.mxu0 0.0
  %774 = vmatpush.msra.mxu0 0.0
  %775 = vmatpush.msra.mxu0 0.0
  %776 = vmatpush.msra.mxu0 0.0
  %777 = vmatpush.msra.mxu0 0.0
  %778 = vmatpush.msra.mxu0 0.0
  %779 = vmatpush.msra.mxu0 0.0
  %780 = vmatpush.msra.mxu0 0.0
  %781 = vmatpush.msra.mxu0 0.0
  %782 = vmatpush.msra.mxu0 0.0
  %783 = vmatpush.msra.mxu0 0.0
  %784 = vmatpush.msra.mxu0 0.0
  %785 = vmatpush.msra.mxu0 0.0
  %786 = vmatpush.msra.mxu0 %v157
  %787 = vmatpush.msra.mxu0 %v38
  %788 = vmatmul.f32.gmra.mxu0 %v84
  %v789 = vpop.f32.mrf.mxu0
  %v790 = vadd.f32 0.0, %v789
  %791 = vmatmul.f32.gmra.mxu0 %v87
  %v792 = vpop.f32.mrf.mxu0
  %v793 = vadd.f32 0.0, %v792
  %794 = vmatmul.f32.gmra.mxu0 %v90
  %v795 = vpop.f32.mrf.mxu0
  %v796 = vadd.f32 0.0, %v795
  %797 = vmatmul.f32.gmra.mxu0 %v93
  %v798 = vpop.f32.mrf.mxu0
  %v799 = vadd.f32 0.0, %v798
  %800 = vdwg.mxu0
  %801 = vmatpush.msra.mxu0 0.0
  %802 = vmatpush.msra.mxu0 0.0
  %803 = vmatpush.msra.mxu0 0.0
  %804 = vmatpush.msra.mxu0 0.0
  %805 = vmatpush.msra.mxu0 0.0
  %806 = vmatpush.msra.mxu0 0.0
  %807 = vmatpush.msra.mxu0 0.0
  %808 = vmatpush.msra.mxu0 0.0
  %809 = vmatpush.msra.mxu0 0.0
  %810 = vmatpush.msra.mxu0 0.0
  %811 = vmatpush.msra.mxu0 0.0
  %812 = vmatpush.msra.mxu0 0.0
  %813 = vmatpush.msra.mxu0 0.0
  %814 = vmatpush.msra.mxu0 0.0
  %815 = vmatpush.msra.mxu0 %v160
  %816 = vmatpush.msra.mxu0 %v39
  %817 = vmatmul.f32.gmra.mxu0 %v84
  %v818 = vpop.f32.mrf.mxu0
  %v819 = vadd.f32 0.0, %v818
  %820 = vmatmul.f32.gmra.mxu0 %v87
  %v821 = vpop.f32.mrf.mxu0
  %v822 = vadd.f32 0.0, %v821
  %823 = vmatmul.f32.gmra.mxu0 %v90
  %v824 = vpop.f32.mrf.mxu0
  %v825 = vadd.f32 0.0, %v824
  %826 = vmatmul.f32.gmra.mxu0 %v93
  %v827 = vpop.f32.mrf.mxu0
  %v828 = vadd.f32 0.0, %v827
  %829 = vdwg.mxu0
  %830 = vmatpush.msra.mxu0 0.0
  %831 = vmatpush.msra.mxu0 0.0
  %832 = vmatpush.msra.mxu0 0.0
  %833 = vmatpush.msra.mxu0 0.0
  %834 = vmatpush.msra.mxu0 0.0
  %835 = vmatpush.msra.mxu0 0.0
  %836 = vmatpush.msra.mxu0 0.0
  %837 = vmatpush.msra.mxu0 0.0
  %838 = vmatpush.msra.mxu0 0.0
  %839 = vmatpush.msra.mxu0 0.0
  %840 = vmatpush.msra.mxu0 0.0
  %841 = vmatpush.msra.mxu0 0.0
  %842 = vmatpush.msra.mxu0 0.0
  %843 = vmatpush.msra.mxu0 0.0
  %844 = vmatpush.msra.mxu0 %v163
  %845 = vmatpush.msra.mxu0 %v40
  %846 = vmatmul.f32.gmra.mxu0 %v84
  %v847 = vpop.f32.mrf.mxu0
  %v848 = vadd.f32 0.0, %v847
  %849 = vmatmul.f32.gmra.mxu0 %v87
  %v850 = vpop.f32.mrf.mxu0
  %v851 = vadd.f32 0.0, %v850
  %852 = vmatmul.f32.gmra.mxu0 %v90
  %v853 = vpop.f32.mrf.mxu0
  %v854 = vadd.f32 0.0, %v853
  %855 = vmatmul.f32.gmra.mxu0 %v93
  %v856 = vpop.f32.mrf.mxu0
  %v857 = vadd.f32 0.0, %v856
  %858 = vdwg.mxu0
  %859 = vmatpush.msra.mxu0 0.0
  %860 = vmatpush.msra.mxu0 0.0
  %861 = vmatpush.msra.mxu0 0.0
  %862 = vmatpush.msra.mxu0 0.0
  %863 = vmatpush.msra.mxu0 0.0
  %864 = vmatpush.msra.mxu0 0.0
  %865 = vmatpush.msra.mxu0 0.0
  %866 = vmatpush.msra.mxu0 0.0
  %867 = vmatpush.msra.mxu0 0.0
  %868 = vmatpush.msra.mxu0 0.0
  %869 = vmatpush.msra.mxu0 0.0
  %870 = vmatpush.msra.mxu0 0.0
  %871 = vmatpush.msra.mxu0 0.0
  %872 = vmatpush.msra.mxu0 0.0
  %873 = vmatpush.msra.mxu0 %v166
  %874 = vmatpush.msra.mxu0 %v41
  %875 = vmatmul.f32.gmra.mxu0 %v84
  %v876 = vpop.f32.mrf.mxu0
  %v877 = vadd.f32 0.0, %v876
  %878 = vmatmul.f32.gmra.mxu0 %v87
  %v879 = vpop.f32.mrf.mxu0
  %v880 = vadd.f32 0.0, %v879
  %881 = vmatmul.f32.gmra.mxu0 %v90
  %v882 = vpop.f32.mrf.mxu0
  %v883 = vadd.f32 0.0, %v882
  %884 = vmatmul.f32.gmra.mxu0 %v93
  %v885 = vpop.f32.mrf.mxu0
  %v886 = vadd.f32 0.0, %v885
  %887 = vdwg.mxu0
  %888 = vmatpush.msra.mxu0 0.0
  %889 = vmatpush.msra.mxu0 0.0
  %890 = vmatpush.msra.mxu0 0.0
  %891 = vmatpush.msra.mxu0 0.0
  %892 = vmatpush.msra.mxu0 0.0
  %893 = vmatpush.msra.mxu0 0.0
  %894 = vmatpush.msra.mxu0 0.0
  %895 = vmatpush.msra.mxu0 0.0
  %896 = vmatpush.msra.mxu0 0.0
  %897 = vmatpush.msra.mxu0 0.0
  %898 = vmatpush.msra.mxu0 0.0
  %899 = vmatpush.msra.mxu0 0.0
  %900 = vmatpush.msra.mxu0 0.0
  %901 = vmatpush.msra.mxu0 0.0
  %902 = vmatpush.msra.mxu0 %v169
  %903 = vmatpush.msra.mxu0 %v42
  %904 = vmatmul.f32.gmra.mxu0 %v84
  %v905 = vpop.f32.mrf.mxu0
  %v906 = vadd.f32 0.0, %v905
  %907 = vmatmul.f32.gmra.mxu0 %v87
  %v908 = vpop.f32.mrf.mxu0
  %v909 = vadd.f32 0.0, %v908
  %910 = vmatmul.f32.gmra.mxu0 %v90
  %v911 = vpop.f32.mrf.mxu0
  %v912 = vadd.f32 0.0, %v911
  %913 = vmatmul.f32.gmra.mxu0 %v93
  %v914 = vpop.f32.mrf.mxu0
  %v915 = vadd.f32 0.0, %v914
  %916 = vdwg.mxu0
  %917 = vmatpush.msra.mxu0 0.0
  %918 = vmatpush.msra.mxu0 0.0
  %919 = vmatpush.msra.mxu0 0.0
  %920 = vmatpush.msra.mxu0 0.0
  %921 = vmatpush.msra.mxu0 0.0
  %922 = vmatpush.msra.mxu0 0.0
  %923 = vmatpush.msra.mxu0 0.0
  %924 = vmatpush.msra.mxu0 0.0
  %925 = vmatpush.msra.mxu0 0.0
  %926 = vmatpush.msra.mxu0 0.0
  %927 = vmatpush.msra.mxu0 0.0
  %928 = vmatpush.msra.mxu0 0.0
  %929 = vmatpush.msra.mxu0 0.0
  %930 = vmatpush.msra.mxu0 0.0
  %931 = vmatpush.msra.mxu0 %v172
  %932 = vmatpush.msra.mxu0 %v43
  %933 = vmatmul.f32.gmra.mxu0 %v84
  %v934 = vpop.f32.mrf.mxu0
  %v935 = vadd.f32 0.0, %v934
  %936 = vmatmul.f32.gmra.mxu0 %v87
  %v937 = vpop.f32.mrf.mxu0
  %v938 = vadd.f32 0.0, %v937
  %939 = vmatmul.f32.gmra.mxu0 %v90
  %v940 = vpop.f32.mrf.mxu0
  %v941 = vadd.f32 0.0, %v940
  %942 = vmatmul.f32.gmra.mxu0 %v93
  %v943 = vpop.f32.mrf.mxu0
  %v944 = vadd.f32 0.0, %v943
  %945 = vdwg.mxu0
  %946 = vmatpush.msra.mxu0 0.0
  %947 = vmatpush.msra.mxu0 0.0
  %948 = vmatpush.msra.mxu0 0.0
  %949 = vmatpush.msra.mxu0 0.0
  %950 = vmatpush.msra.mxu0 0.0
  %951 = vmatpush.msra.mxu0 0.0
  %952 = vmatpush.msra.mxu0 0.0
  %953 = vmatpush.msra.mxu0 0.0
  %954 = vmatpush.msra.mxu0 0.0
  %955 = vmatpush.msra.mxu0 0.0
  %956 = vmatpush.msra.mxu0 0.0
  %957 = vmatpush.msra.mxu0 0.0
  %958 = vmatpush.msra.mxu0 0.0
  %959 = vmatpush.msra.mxu0 0.0
  %960 = vmatpush.msra.mxu0 %v175
  %961 = vmatpush.msra.mxu0 %v44
  %962 = vmatmul.f32.gmra.mxu0 %v84
  %v963 = vpop.f32.mrf.mxu0
  %v964 = vadd.f32 0.0, %v963
  %965 = vmatmul.f32.gmra.mxu0 %v87
  %v966 = vpop.f32.mrf.mxu0
  %v967 = vadd.f32 0.0, %v966
  %968 = vmatmul.f32.gmra.mxu0 %v90
  %v969 = vpop.f32.mrf.mxu0
  %v970 = vadd.f32 0.0, %v969
  %971 = vmatmul.f32.gmra.mxu0 %v93
  %v972 = vpop.f32.mrf.mxu0
  %v973 = vadd.f32 0.0, %v972
  %974 = vdwg.mxu0
  %975 = vmatpush.msra.mxu0 0.0
  %976 = vmatpush.msra.mxu0 0.0
  %977 = vmatpush.msra.mxu0 0.0
  %978 = vmatpush.msra.mxu0 0.0
  %979 = vmatpush.msra.mxu0 0.0
  %980 = vmatpush.msra.mxu0 0.0
  %981 = vmatpush.msra.mxu0 0.0
  %982 = vmatpush.msra.mxu0 0.0
  %983 = vmatpush.msra.mxu0 0.0
  %984 = vmatpush.msra.mxu0 0.0
  %985 = vmatpush.msra.mxu0 0.0
  %986 = vmatpush.msra.mxu0 0.0
  %987 = vmatpush.msra.mxu0 0.0
  %988 = vmatpush.msra.mxu0 0.0
  %989 = vmatpush.msra.mxu0 %v178
  %990 = vmatpush.msra.mxu0 %v45
  %991 = vmatmul.f32.gmra.mxu0 %v84
  %v992 = vpop.f32.mrf.mxu0
  %v993 = vadd.f32 0.0, %v992
  %994 = vmatmul.f32.gmra.mxu0 %v87
  %v995 = vpop.f32.mrf.mxu0
  %v996 = vadd.f32 0.0, %v995
  %997 = vmatmul.f32.gmra.mxu0 %v90
  %v998 = vpop.f32.mrf.mxu0
  %v999 = vadd.f32 0.0, %v998
  %1000 = vmatmul.f32.gmra.mxu0 %v93
  %v1001 = vpop.f32.mrf.mxu0
  %v1002 = vadd.f32 0.0, %v1001
  %1003 = vdwg.mxu0
  %1004 = vmatpush.msra.mxu0 0.0
  %1005 = vmatpush.msra.mxu0 0.0
  %1006 = vmatpush.msra.mxu0 0.0
  %1007 = vmatpush.msra.mxu0 0.0
  %1008 = vmatpush.msra.mxu0 0.0
  %1009 = vmatpush.msra.mxu0 0.0
  %1010 = vmatpush.msra.mxu0 0.0
  %1011 = vmatpush.msra.mxu0 0.0
  %1012 = vmatpush.msra.mxu0 0.0
  %1013 = vmatpush.msra.mxu0 0.0
  %1014 = vmatpush.msra.mxu0 0.0
  %1015 = vmatpush.msra.mxu0 0.0
  %1016 = vmatpush.msra.mxu0 0.0
  %1017 = vmatpush.msra.mxu0 0.0
  %1018 = vmatpush.msra.mxu0 %v181
  %1019 = vmatpush.msra.mxu0 %v46
  %1020 = vmatmul.f32.gmra.mxu0 %v84
  %v1021 = vpop.f32.mrf.mxu0
  %v1022 = vadd.f32 0.0, %v1021
  %1023 = vmatmul.f32.gmra.mxu0 %v87
  %v1024 = vpop.f32.mrf.mxu0
  %v1025 = vadd.f32 0.0, %v1024
  %1026 = vmatmul.f32.gmra.mxu0 %v90
  %v1027 = vpop.f32.mrf.mxu0
  %v1028 = vadd.f32 0.0, %v1027
  %1029 = vmatmul.f32.gmra.mxu0 %v93
  %v1030 = vpop.f32.mrf.mxu0
  %v1031 = vadd.f32 0.0, %v1030
  %1032 = vdwg.mxu0
  %1033 = vmatpush.msra.mxu0 0.0
  %1034 = vmatpush.msra.mxu0 0.0
  %1035 = vmatpush.msra.mxu0 0.0
  %1036 = vmatpush.msra.mxu0 0.0
  %1037 = vmatpush.msra.mxu0 0.0
  %1038 = vmatpush.msra.mxu0 0.0
  %1039 = vmatpush.msra.mxu0 0.0
  %1040 = vmatpush.msra.mxu0 0.0
  %1041 = vmatpush.msra.mxu0 0.0
  %1042 = vmatpush.msra.mxu0 0.0
  %1043 = vmatpush.msra.mxu0 0.0
  %1044 = vmatpush.msra.mxu0 0.0
  %1045 = vmatpush.msra.mxu0 0.0
  %1046 = vmatpush.msra.mxu0 0.0
  %1047 = vmatpush.msra.mxu0 %v184
  %1048 = vmatpush.msra.mxu0 %v47
  %1049 = vmatmul.f32.gmra.mxu0 %v84
  %v1050 = vpop.f32.mrf.mxu0
  %v1051 = vadd.f32 0.0, %v1050
  %1052 = vmatmul.f32.gmra.mxu0 %v87
  %v1053 = vpop.f32.mrf.mxu0
  %v1054 = vadd.f32 0.0, %v1053
  %1055 = vmatmul.f32.gmra.mxu0 %v90
  %v1056 = vpop.f32.mrf.mxu0
  %v1057 = vadd.f32 0.0, %v1056
  %1058 = vmatmul.f32.gmra.mxu0 %v93
  %v1059 = vpop.f32.mrf.mxu0
  %v1060 = vadd.f32 0.0, %v1059
  %1061 = vdwg.mxu0
  %1062 = vmatpush.msra.mxu0 0.0
  %1063 = vmatpush.msra.mxu0 0.0
  %1064 = vmatpush.msra.mxu0 0.0
  %1065 = vmatpush.msra.mxu0 0.0
  %1066 = vmatpush.msra.mxu0 0.0
  %1067 = vmatpush.msra.mxu0 0.0
  %1068 = vmatpush.msra.mxu0 0.0
  %1069 = vmatpush.msra.mxu0 0.0
  %1070 = vmatpush.msra.mxu0 0.0
  %1071 = vmatpush.msra.mxu0 0.0
  %1072 = vmatpush.msra.mxu0 0.0
  %1073 = vmatpush.msra.mxu0 0.0
  %1074 = vmatpush.msra.mxu0 0.0
  %1075 = vmatpush.msra.mxu0 0.0
  %1076 = vmatpush.msra.mxu0 %v187
  %1077 = vmatpush.msra.mxu0 %v48
  %1078 = vmatmul.f32.gmra.mxu0 %v84
  %v1079 = vpop.f32.mrf.mxu0
  %v1080 = vadd.f32 0.0, %v1079
  %1081 = vmatmul.f32.gmra.mxu0 %v87
  %v1082 = vpop.f32.mrf.mxu0
  %v1083 = vadd.f32 0.0, %v1082
  %1084 = vmatmul.f32.gmra.mxu0 %v90
  %v1085 = vpop.f32.mrf.mxu0
  %v1086 = vadd.f32 0.0, %v1085
  %1087 = vmatmul.f32.gmra.mxu0 %v93
  %v1088 = vpop.f32.mrf.mxu0
  %v1089 = vadd.f32 0.0, %v1088
  %1090 = vdwg.mxu0
  %1091 = vmatpush.msra.mxu0 0.0
  %1092 = vmatpush.msra.mxu0 0.0
  %1093 = vmatpush.msra.mxu0 0.0
  %1094 = vmatpush.msra.mxu0 0.0
  %1095 = vmatpush.msra.mxu0 0.0
  %1096 = vmatpush.msra.mxu0 0.0
  %1097 = vmatpush.msra.mxu0 0.0
  %1098 = vmatpush.msra.mxu0 0.0
  %1099 = vmatpush.msra.mxu0 0.0
  %1100 = vmatpush.msra.mxu0 0.0
  %1101 = vmatpush.msra.mxu0 0.0
  %1102 = vmatpush.msra.mxu0 0.0
  %1103 = vmatpush.msra.mxu0 0.0
  %1104 = vmatpush.msra.mxu0 0.0
  %1105 = vmatpush.msra.mxu0 %v190
  %1106 = vmatpush.msra.mxu0 %v49
  %1107 = vmatmul.f32.gmra.mxu0 %v84
  %v1108 = vpop.f32.mrf.mxu0
  %v1109 = vadd.f32 0.0, %v1108
  %1110 = vmatmul.f32.gmra.mxu0 %v87
  %v1111 = vpop.f32.mrf.mxu0
  %v1112 = vadd.f32 0.0, %v1111
  %1113 = vmatmul.f32.gmra.mxu0 %v90
  %v1114 = vpop.f32.mrf.mxu0
  %v1115 = vadd.f32 0.0, %v1114
  %1116 = vmatmul.f32.gmra.mxu0 %v93
  %v1117 = vpop.f32.mrf.mxu0
  %v1118 = vadd.f32 0.0, %v1117
  %1119 = vdwg.mxu0
  %v1120 = vld [vmem:[%s2] sm:$0xff]
  %v1121 = vld [vmem:[%s2 + $0x8] sm:$0xff]
  %v1122 = vld [vmem:[%s2 + $0x10] sm:$0xff]
  %v1123 = vld [vmem:[%s2 + $0x18] sm:$0xff]
  %v1124 = vmax.f32 %v210, %v239
  %v1125 = vmax.f32 %v213, %v242
  %v1126 = vmax.f32 %v216, %v245
  %v1127 = vmax.f32 %v219, %v248
  %v1128 = vmax.f32 %v268, %v297
  %v1129 = vmax.f32 %v271, %v300
  %v1130 = vmax.f32 %v274, %v303
  %v1131 = vmax.f32 %v277, %v306
  %v1132 = vmax.f32 %v1124, %v1128
  %v1133 = vmax.f32 %v1125, %v1129
  %v1134 = vmax.f32 %v1126, %v1130
  %v1135 = vmax.f32 %v1127, %v1131
  %1137 = vset.pattern.permute.xlu0 0
  %1138 = vperm.xlu0 %1137, %v1120
  %v1139 = vpop.permute.xlu0 %1138
  %1142 = vset.pattern.permute.xlu0 0
  %1143 = vperm.xlu0 %1142, %v1121
  %v1144 = vpop.permute.xlu0 %1143
  %1147 = vset.pattern.permute.xlu0 0
  %1148 = vperm.xlu0 %1147, %v1122
  %v1149 = vpop.permute.xlu0 %1148
  %1152 = vset.pattern.permute.xlu0 0
  %1153 = vperm.xlu0 %1152, %v1123
  %v1154 = vpop.permute.xlu0 %1153
  %v1156 = vadd.f32 %v1132, %v1139
  %v1157 = vadd.f32 %v1133, %v1144
  %v1158 = vadd.f32 %v1134, %v1149
  %v1159 = vadd.f32 %v1135, %v1154
  %v1160 = vmax.f32 %v1156, 0.0
  %v1161 = vmax.f32 %v1157, 0.0
  %v1162 = vmax.f32 %v1158, 0.0
  %v1163 = vmax.f32 %v1159, 0.0
  %1164 = vst [vmem:[%s3] sm:$0xff] %v1160
  %1165 = vst [vmem:[%s3 + $0x8] sm:$0xff] %v1161
  %1166 = vst [vmem:[%s3 + $0x10] sm:$0xff] %v1162
  %1167 = vst [vmem:[%s3 + $0x18] sm:$0xff] %v1163
  %v1168 = vmax.f32 %v326, %v355
  %v1169 = vmax.f32 %v329, %v358
  %v1170 = vmax.f32 %v332, %v361
  %v1171 = vmax.f32 %v335, %v364
  %v1172 = vmax.f32 %v384, %v413
  %v1173 = vmax.f32 %v387, %v416
  %v1174 = vmax.f32 %v390, %v419
  %v1175 = vmax.f32 %v393, %v422
  %v1176 = vmax.f32 %v1168, %v1172
  %v1177 = vmax.f32 %v1169, %v1173
  %v1178 = vmax.f32 %v1170, %v1174
  %v1179 = vmax.f32 %v1171, %v1175
  %v1180 = vadd.f32 %v1176, %v1139
  %v1181 = vadd.f32 %v1177, %v1144
  %v1182 = vadd.f32 %v1178, %v1149
  %v1183 = vadd.f32 %v1179, %v1154
  %v1184 = vmax.f32 %v1180, 0.0
  %v1185 = vmax.f32 %v1181, 0.0
  %v1186 = vmax.f32 %v1182, 0.0
  %v1187 = vmax.f32 %v1183, 0.0
  %s1188 = scalar_lea.vmem %s3, 32
  %1189 = vst [vmem:[%s1188] sm:$0xff] %v1184
  %1190 = vst [vmem:[%s1188 + $0x8] sm:$0xff] %v1185
  %1191 = vst [vmem:[%s1188 + $0x10] sm:$0xff] %v1186
  %1192 = vst [vmem:[%s1188 + $0x18] sm:$0xff] %v1187
  %v1193 = vmax.f32 %v442, %v471
  %v1194 = vmax.f32 %v445, %v474
  %v1195 = vmax.f32 %v448, %v477
  %v1196 = vmax.f32 %v451, %v480
  %v1197 = vmax.f32 %v500, %v529
  %v1198 = vmax.f32 %v503, %v532
  %v1199 = vmax.f32 %v506, %v535
  %v1200 = vmax.f32 %v509, %v538
  %v1201 = vmax.f32 %v1193, %v1197
  %v1202 = vmax.f32 %v1194, %v1198
  %v1203 = vmax.f32 %v1195, %v1199
  %v1204 = vmax.f32 %v1196, %v1200
  %v1205 = vadd.f32 %v1201, %v1139
  %v1206 = vadd.f32 %v1202, %v1144
  %v1207 = vadd.f32 %v1203, %v1149
  %v1208 = vadd.f32 %v1204, %v1154
  %v1209 = vmax.f32 %v1205, 0.0
  %v1210 = vmax.f32 %v1206, 0.0
  %v1211 = vmax.f32 %v1207, 0.0
  %v1212 = vmax.f32 %v1208, 0.0
  %s1213 = scalar_lea.vmem %s3, 64
  %1214 = vst [vmem:[%s1213] sm:$0xff] %v1209
  %1215 = vst [vmem:[%s1213 + $0x8] sm:$0xff] %v1210
  %1216 = vst [vmem:[%s1213 + $0x10] sm:$0xff] %v1211
  %1217 = vst [vmem:[%s1213 + $0x18] sm:$0xff] %v1212
  %v1218 = vmax.f32 %v558, %v587
  %v1219 = vmax.f32 %v561, %v590
  %v1220 = vmax.f32 %v564, %v593
  %v1221 = vmax.f32 %v567, %v596
  %v1222 = vmax.f32 %v616, %v645
  %v1223 = vmax.f32 %v619, %v648
  %v1224 = vmax.f32 %v622, %v651
  %v1225 = vmax.f32 %v625, %v654
  %v1226 = vmax.f32 %v1218, %v1222
  %v1227 = vmax.f32 %v1219, %v1223
  %v1228 = vmax.f32 %v1220, %v1224
  %v1229 = vmax.f32 %v1221, %v1225
  %v1230 = vadd.f32 %v1226, %v1139
  %v1231 = vadd.f32 %v1227, %v1144
  %v1232 = vadd.f32 %v1228, %v1149
  %v1233 = vadd.f32 %v1229, %v1154
  %v1234 = vmax.f32 %v1230, 0.0
  %v1235 = vmax.f32 %v1231, 0.0
  %v1236 = vmax.f32 %v1232, 0.0
  %v1237 = vmax.f32 %v1233, 0.0
  %s1238 = scalar_lea.vmem %s3, 96
  %1239 = vst [vmem:[%s1238] sm:$0xff] %v1234
  %1240 = vst [vmem:[%s1238 + $0x8] sm:$0xff] %v1235
  %1241 = vst [vmem:[%s1238 + $0x10] sm:$0xff] %v1236
  %1242 = vst [vmem:[%s1238 + $0x18] sm:$0xff] %v1237
  %v1243 = vmax.f32 %v674, %v703
  %v1244 = vmax.f32 %v677, %v706
  %v1245 = vmax.f32 %v680, %v709
  %v1246 = vmax.f32 %v683, %v712
  %v1247 = vmax.f32 %v732, %v761
  %v1248 = vmax.f32 %v735, %v764
  %v1249 = vmax.f32 %v738, %v767
  %v1250 = vmax.f32 %v741, %v770
  %v1251 = vmax.f32 %v1243, %v1247
  %v1252 = vmax.f32 %v1244, %v1248
  %v1253 = vmax.f32 %v1245, %v1249
  %v1254 = vmax.f32 %v1246, %v1250
  %v1255 = vadd.f32 %v1251, %v1139
  %v1256 = vadd.f32 %v1252, %v1144
  %v1257 = vadd.f32 %v1253, %v1149
  %v1258 = vadd.f32 %v1254, %v1154
  %v1259 = vmax.f32 %v1255, 0.0
  %v1260 = vmax.f32 %v1256, 0.0
  %v1261 = vmax.f32 %v1257, 0.0
  %v1262 = vmax.f32 %v1258, 0.0
  %s1263 = scalar_lea.vmem %s3, 128
  %1264 = vst [vmem:[%s1263] sm:$0xff] %v1259
  %1265 = vst [vmem:[%s1263 + $0x8] sm:$0xff] %v1260
  %1266 = vst [vmem:[%s1263 + $0x10] sm:$0xff] %v1261
  %1267 = vst [vmem:[%s1263 + $0x18] sm:$0xff] %v1262
  %v1268 = vmax.f32 %v790, %v819
  %v1269 = vmax.f32 %v793, %v822
  %v1270 = vmax.f32 %v796, %v825
  %v1271 = vmax.f32 %v799, %v828
  %v1272 = vmax.f32 %v848, %v877
  %v1273 = vmax.f32 %v851, %v880
  %v1274 = vmax.f32 %v854, %v883
  %v1275 = vmax.f32 %v857, %v886
  %v1276 = vmax.f32 %v1268, %v1272
  %v1277 = vmax.f32 %v1269, %v1273
  %v1278 = vmax.f32 %v1270, %v1274
  %v1279 = vmax.f32 %v1271, %v1275
  %v1280 = vadd.f32 %v1276, %v1139
  %v1281 = vadd.f32 %v1277, %v1144
  %v1282 = vadd.f32 %v1278, %v1149
  %v1283 = vadd.f32 %v1279, %v1154
  %v1284 = vmax.f32 %v1280, 0.0
  %v1285 = vmax.f32 %v1281, 0.0
  %v1286 = vmax.f32 %v1282, 0.0
  %v1287 = vmax.f32 %v1283, 0.0
  %s1288 = scalar_lea.vmem %s3, 160
  %1289 = vst [vmem:[%s1288] sm:$0xff] %v1284
  %1290 = vst [vmem:[%s1288 + $0x8] sm:$0xff] %v1285
  %1291 = vst [vmem:[%s1288 + $0x10] sm:$0xff] %v1286
  %1292 = vst [vmem:[%s1288 + $0x18] sm:$0xff] %v1287
  %v1293 = vmax.f32 %v906, %v935
  %v1294 = vmax.f32 %v909, %v938
  %v1295 = vmax.f32 %v912, %v941
  %v1296 = vmax.f32 %v915, %v944
  %v1297 = vmax.f32 %v964, %v993
  %v1298 = vmax.f32 %v967, %v996
  %v1299 = vmax.f32 %v970, %v999
  %v1300 = vmax.f32 %v973, %v1002
  %v1301 = vmax.f32 %v1293, %v1297
  %v1302 = vmax.f32 %v1294, %v1298
  %v1303 = vmax.f32 %v1295, %v1299
  %v1304 = vmax.f32 %v1296, %v1300
  %v1305 = vadd.f32 %v1301, %v1139
  %v1306 = vadd.f32 %v1302, %v1144
  %v1307 = vadd.f32 %v1303, %v1149
  %v1308 = vadd.f32 %v1304, %v1154
  %v1309 = vmax.f32 %v1305, 0.0
  %v1310 = vmax.f32 %v1306, 0.0
  %v1311 = vmax.f32 %v1307, 0.0
  %v1312 = vmax.f32 %v1308, 0.0
  %s1313 = scalar_lea.vmem %s3, 192
  %1314 = vst [vmem:[%s1313] sm:$0xff] %v1309
  %1315 = vst [vmem:[%s1313 + $0x8] sm:$0xff] %v1310
  %1316 = vst [vmem:[%s1313 + $0x10] sm:$0xff] %v1311
  %1317 = vst [vmem:[%s1313 + $0x18] sm:$0xff] %v1312
  %v1318 = vmax.f32 %v1022, %v1051
  %v1319 = vmax.f32 %v1025, %v1054
  %v1320 = vmax.f32 %v1028, %v1057
  %v1321 = vmax.f32 %v1031, %v1060
  %v1322 = vmax.f32 %v1080, %v1109
  %v1323 = vmax.f32 %v1083, %v1112
  %v1324 = vmax.f32 %v1086, %v1115
  %v1325 = vmax.f32 %v1089, %v1118
  %v1326 = vmax.f32 %v1318, %v1322
  %v1327 = vmax.f32 %v1319, %v1323
  %v1328 = vmax.f32 %v1320, %v1324
  %v1329 = vmax.f32 %v1321, %v1325
  %v1330 = vadd.f32 %v1326, %v1139
  %v1331 = vadd.f32 %v1327, %v1144
  %v1332 = vadd.f32 %v1328, %v1149
  %v1333 = vadd.f32 %v1329, %v1154
  %v1334 = vmax.f32 %v1330, 0.0
  %v1335 = vmax.f32 %v1331, 0.0
  %v1336 = vmax.f32 %v1332, 0.0
  %v1337 = vmax.f32 %v1333, 0.0
  %s1338 = scalar_lea.vmem %s3, 224
  %1339 = vst [vmem:[%s1338] sm:$0xff] %v1334
  %1340 = vst [vmem:[%s1338 + $0x8] sm:$0xff] %v1335
  %1341 = vst [vmem:[%s1338 + $0x10] sm:$0xff] %v1336
  %1342 = vst [vmem:[%s1338 + $0x18] sm:$0xff] %v1337
  // Predicated region
  $region14: #{cnn_1c_forward.2} parent=0 // pred_check
    _
  $region15: #{cnn_1c_forward.2} parent=0 // pred_check_branch
    %1344 = sbr.rel (0) target = $region17
  $region16: #{cnn_1c_forward.2} parent=0 // pred_region
    _
  $region17: #{cnn_1c_forward.2} parent=0 // pred_fallthru
    _
  // Predicated region
  $region18: #{cnn_1c_forward.2} parent=0 // pred_check
    _
  $region19: #{cnn_1c_forward.2} parent=0 // pred_check_branch
    %1346 = sbr.rel (0) target = $region21
  $region20: #{cnn_1c_forward.2} parent=0 // pred_region
    _
  $region21: #{cnn_1c_forward.2} parent=0 // pred_fallthru
    _

// kernel: cnn_1c_forward.3
$region0: #{cnn_1c_forward.3}
  #allocation0 [shape = 'u32[]', space=smem, size = 0x4, offset = 0x4, fixed_abs, tag = 'smem constant byte address 0x4 - core index']
  #allocation1 [shape = 'u32[72,128]{1,0:T(1,128)}', space=vmem, size = 0x9000, scoped, tag = 'internal scratch']
  %s0 = inlined_call_operand.vmem [shape: f32[8,4096], index: 0, kind: input, shape index: {}]
  %s1 = inlined_call_operand.vmem [shape: f32[4096,64], index: 1, kind: input, shape index: {}]
  %s2 = inlined_call_operand.vmem [shape: f32[1,64], index: 2, kind: input, shape index: {}]
  %s3 = inlined_call_operand.vmem [shape: f32[64,128], index: 3, kind: input, shape index: {}]
  %s4 = inlined_call_operand.vmem [shape: f32[1,128], index: 4, kind: input, shape index: {}]
  %s5 = inlined_call_operand.vmem [shape: f32[8,128], index: 5, kind: output, shape index: {}]
  %s6 = sld [smem:[#allocation0]]
  $region30: #{cnn_1c_forward.3} parent=0
    _
  %s8 = ssub.s32 1, %s6
  %s9 = scalar_select 0, %s8, %s6
  // Predicated region
  $region2: #{cnn_1c_forward.3} parent=0 // pred_check
    _
  $region3: #{cnn_1c_forward.3} parent=0 // pred_check_branch
    %11 = sbr.rel (0) target = $region5
  $region4: #{cnn_1c_forward.3} parent=0 // pred_region
    _
  $region5: #{cnn_1c_forward.3} parent=0 // pred_fallthru
    _
  // Predicated region
  $region6: #{cnn_1c_forward.3} parent=0 // pred_check
    _
  $region7: #{cnn_1c_forward.3} parent=0 // pred_check_branch
    %13 = sbr.rel (0) target = $region9
  $region8: #{cnn_1c_forward.3} parent=0 // pred_region
    _
  $region9: #{cnn_1c_forward.3} parent=0 // pred_fallthru
    _
  // Predicated region
  $region10: #{cnn_1c_forward.3} parent=0 // pred_check
    _
  $region11: #{cnn_1c_forward.3} parent=0 // pred_check_branch
    %15 = sbr.rel (0) target = $region13
  $region12: #{cnn_1c_forward.3} parent=0 // pred_region
    _
  $region13: #{cnn_1c_forward.3} parent=0 // pred_fallthru
    _
  // Predicated region
  $region14: #{cnn_1c_forward.3} parent=0 // pred_check
    _
  $region15: #{cnn_1c_forward.3} parent=0 // pred_check_branch
    %17 = sbr.rel (0) target = $region17
  $region16: #{cnn_1c_forward.3} parent=0 // pred_region
    _
  $region17: #{cnn_1c_forward.3} parent=0 // pred_fallthru
    _
  // Predicated region
  $region18: #{cnn_1c_forward.3} parent=0 // pred_check
    _
  $region19: #{cnn_1c_forward.3} parent=0 // pred_check_branch
    %19 = sbr.rel (0) target = $region21
  $region20: #{cnn_1c_forward.3} parent=0 // pred_region
    _
  $region21: #{cnn_1c_forward.3} parent=0 // pred_fallthru
    _
  %v20 = vld [vmem:[%s0] sm:$0xff]
  %v21 = vld [vmem:[%s0 + $0x8] sm:$0xff]
  %v22 = vld [vmem:[%s0 + $0x10] sm:$0xff]
  %v23 = vld [vmem:[%s0 + $0x18] sm:$0xff]
  %v24 = vld [vmem:[%s0 + $0x20] sm:$0xff]
  %v25 = vld [vmem:[%s0 + $0x28] sm:$0xff]
  %v26 = vld [vmem:[%s0 + $0x30] sm:$0xff]
  %v27 = vld [vmem:[%s0 + $0x38] sm:$0xff]
  %v28 = vld [vmem:[%s0 + $0x40] sm:$0xff]
  %v29 = vld [vmem:[%s0 + $0x48] sm:$0xff]
  %v30 = vld [vmem:[%s0 + $0x50] sm:$0xff]
  %v31 = vld [vmem:[%s0 + $0x58] sm:$0xff]
  %v32 = vld [vmem:[%s0 + $0x60] sm:$0xff]
  %v33 = vld [vmem:[%s0 + $0x68] sm:$0xff]
  %v34 = vld [vmem:[%s0 + $0x70] sm:$0xff]
  %v35 = vld [vmem:[%s0 + $0x78] sm:$0xff]
  %v36 = vld [vmem:[%s0 + $0x80] sm:$0xff]
  %v37 = vld [vmem:[%s0 + $0x88] sm:$0xff]
  %v38 = vld [vmem:[%s0 + $0x90] sm:$0xff]
  %v39 = vld [vmem:[%s0 + $0x98] sm:$0xff]
  %v40 = vld [vmem:[%s0 + $0xa0] sm:$0xff]
  %v41 = vld [vmem:[%s0 + $0xa8] sm:$0xff]
  %v42 = vld [vmem:[%s0 + $0xb0] sm:$0xff]
  %v43 = vld [vmem:[%s0 + $0xb8] sm:$0xff]
  %v44 = vld [vmem:[%s0 + $0xc0] sm:$0xff]
  %v45 = vld [vmem:[%s0 + $0xc8] sm:$0xff]
  %v46 = vld [vmem:[%s0 + $0xd0] sm:$0xff]
  %v47 = vld [vmem:[%s0 + $0xd8] sm:$0xff]
  %v48 = vld [vmem:[%s0 + $0xe0] sm:$0xff]
  %v49 = vld [vmem:[%s0 + $0xe8] sm:$0xff]
  %v50 = vld [vmem:[%s0 + $0xf0] sm:$0xff]
  %v51 = vld [vmem:[%s0 + $0xf8] sm:$0xff]
  %v52 = vld [vmem:[%s1] sm:$0xff]
  %v53 = vld [vmem:[%s1 + $0x8] sm:$0xff]
  %v54 = vld [vmem:[%s1 + $0x10] sm:$0xff]
  %v55 = vld [vmem:[%s1 + $0x18] sm:$0xff]
  %v56 = vld [vmem:[%s1 + $0x20] sm:$0xff]
  %v57 = vld [vmem:[%s1 + $0x28] sm:$0xff]
  %v58 = vld [vmem:[%s1 + $0x30] sm:$0xff]
  %v59 = vld [vmem:[%s1 + $0x38] sm:$0xff]
  %v60 = vld [vmem:[%s1 + $0x40] sm:$0xff]
  %v61 = vld [vmem:[%s1 + $0x48] sm:$0xff]
  %v62 = vld [vmem:[%s1 + $0x50] sm:$0xff]
  %v63 = vld [vmem:[%s1 + $0x58] sm:$0xff]
  %v64 = vld [vmem:[%s1 + $0x60] sm:$0xff]
  %v65 = vld [vmem:[%s1 + $0x68] sm:$0xff]
  %v66 = vld [vmem:[%s1 + $0x70] sm:$0xff]
  %v67 = vld [vmem:[%s1 + $0x78] sm:$0xff]
  %v68 = vld [vmem:[%s1 + $0x80] sm:$0xff]
  %v69 = vld [vmem:[%s1 + $0x88] sm:$0xff]
  %v70 = vld [vmem:[%s1 + $0x90] sm:$0xff]
  %v71 = vld [vmem:[%s1 + $0x98] sm:$0xff]
  %v72 = vld [vmem:[%s1 + $0xa0] sm:$0xff]
  %v73 = vld [vmem:[%s1 + $0xa8] sm:$0xff]
  %v74 = vld [vmem:[%s1 + $0xb0] sm:$0xff]
  %v75 = vld [vmem:[%s1 + $0xb8] sm:$0xff]
  %v76 = vld [vmem:[%s1 + $0xc0] sm:$0xff]
  %v77 = vld [vmem:[%s1 + $0xc8] sm:$0xff]
  %v78 = vld [vmem:[%s1 + $0xd0] sm:$0xff]
  %v79 = vld [vmem:[%s1 + $0xd8] sm:$0xff]
  %v80 = vld [vmem:[%s1 + $0xe0] sm:$0xff]
  %v81 = vld [vmem:[%s1 + $0xe8] sm:$0xff]
  %v82 = vld [vmem:[%s1 + $0xf0] sm:$0xff]
  %v83 = vld [vmem:[%s1 + $0xf8] sm:$0xff]
  %v84 = vld [vmem:[%s1 + $0x100] sm:$0xff]
  %v85 = vld [vmem:[%s1 + $0x108] sm:$0xff]
  %v86 = vld [vmem:[%s1 + $0x110] sm:$0xff]
  %v87 = vld [vmem:[%s1 + $0x118] sm:$0xff]
  %v88 = vld [vmem:[%s1 + $0x120] sm:$0xff]
  %v89 = vld [vmem:[%s1 + $0x128] sm:$0xff]
  %v90 = vld [vmem:[%s1 + $0x130] sm:$0xff]
  %v91 = vld [vmem:[%s1 + $0x138] sm:$0xff]
  %v92 = vld [vmem:[%s1 + $0x140] sm:$0xff]
  %v93 = vld [vmem:[%s1 + $0x148] sm:$0xff]
  %v94 = vld [vmem:[%s1 + $0x150] sm:$0xff]
  %v95 = vld [vmem:[%s1 + $0x158] sm:$0xff]
  %v96 = vld [vmem:[%s1 + $0x160] sm:$0xff]
  %v97 = vld [vmem:[%s1 + $0x168] sm:$0xff]
  %v98 = vld [vmem:[%s1 + $0x170] sm:$0xff]
  %v99 = vld [vmem:[%s1 + $0x178] sm:$0xff]
  %v100 = vld [vmem:[%s1 + $0x180] sm:$0xff]
  %v101 = vld [vmem:[%s1 + $0x188] sm:$0xff]
  %v102 = vld [vmem:[%s1 + $0x190] sm:$0xff]
  %v103 = vld [vmem:[%s1 + $0x198] sm:$0xff]
  %v104 = vld [vmem:[%s1 + $0x1a0] sm:$0xff]
  %v105 = vld [vmem:[%s1 + $0x1a8] sm:$0xff]
  %v106 = vld [vmem:[%s1 + $0x1b0] sm:$0xff]
  %v107 = vld [vmem:[%s1 + $0x1b8] sm:$0xff]
  %v108 = vld [vmem:[%s1 + $0x1c0] sm:$0xff]
  %v109 = vld [vmem:[%s1 + $0x1c8] sm:$0xff]
  %v110 = vld [vmem:[%s1 + $0x1d0] sm:$0xff]
  %v111 = vld [vmem:[%s1 + $0x1d8] sm:$0xff]
  %v112 = vld [vmem:[%s1 + $0x1e0] sm:$0xff]
  %v113 = vld [vmem:[%s1 + $0x1e8] sm:$0xff]
  %v114 = vld [vmem:[%s1 + $0x1f0] sm:$0xff]
  %v115 = vld [vmem:[%s1 + $0x1f8] sm:$0xff]
  %v116 = vld [vmem:[%s1 + $0x200] sm:$0xff]
  %v117 = vld [vmem:[%s1 + $0x208] sm:$0xff]
  %v118 = vld [vmem:[%s1 + $0x210] sm:$0xff]
  %v119 = vld [vmem:[%s1 + $0x218] sm:$0xff]
  %v120 = vld [vmem:[%s1 + $0x220] sm:$0xff]
  %v121 = vld [vmem:[%s1 + $0x228] sm:$0xff]
  %v122 = vld [vmem:[%s1 + $0x230] sm:$0xff]
  %v123 = vld [vmem:[%s1 + $0x238] sm:$0xff]
  %v124 = vld [vmem:[%s1 + $0x240] sm:$0xff]
  %v125 = vld [vmem:[%s1 + $0x248] sm:$0xff]
  %v126 = vld [vmem:[%s1 + $0x250] sm:$0xff]
  %v127 = vld [vmem:[%s1 + $0x258] sm:$0xff]
  %v128 = vld [vmem:[%s1 + $0x260] sm:$0xff]
  %v129 = vld [vmem:[%s1 + $0x268] sm:$0xff]
  %v130 = vld [vmem:[%s1 + $0x270] sm:$0xff]
  %v131 = vld [vmem:[%s1 + $0x278] sm:$0xff]
  %v132 = vld [vmem:[%s1 + $0x280] sm:$0xff]
  %v133 = vld [vmem:[%s1 + $0x288] sm:$0xff]
  %v134 = vld [vmem:[%s1 + $0x290] sm:$0xff]
  %v135 = vld [vmem:[%s1 + $0x298] sm:$0xff]
  %v136 = vld [vmem:[%s1 + $0x2a0] sm:$0xff]
  %v137 = vld [vmem:[%s1 + $0x2a8] sm:$0xff]
  %v138 = vld [vmem:[%s1 + $0x2b0] sm:$0xff]
  %v139 = vld [vmem:[%s1 + $0x2b8] sm:$0xff]
  %v140 = vld [vmem:[%s1 + $0x2c0] sm:$0xff]
  %v141 = vld [vmem:[%s1 + $0x2c8] sm:$0xff]
  %v142 = vld [vmem:[%s1 + $0x2d0] sm:$0xff]
  %v143 = vld [vmem:[%s1 + $0x2d8] sm:$0xff]
  %v144 = vld [vmem:[%s1 + $0x2e0] sm:$0xff]
  %v145 = vld [vmem:[%s1 + $0x2e8] sm:$0xff]
  %v146 = vld [vmem:[%s1 + $0x2f0] sm:$0xff]
  %v147 = vld [vmem:[%s1 + $0x2f8] sm:$0xff]
  %v148 = vld [vmem:[%s1 + $0x300] sm:$0xff]
  %v149 = vld [vmem:[%s1 + $0x308] sm:$0xff]
  %v150 = vld [vmem:[%s1 + $0x310] sm:$0xff]
  %v151 = vld [vmem:[%s1 + $0x318] sm:$0xff]
  %v152 = vld [vmem:[%s1 + $0x320] sm:$0xff]
  %v153 = vld [vmem:[%s1 + $0x328] sm:$0xff]
  %v154 = vld [vmem:[%s1 + $0x330] sm:$0xff]
  %v155 = vld [vmem:[%s1 + $0x338] sm:$0xff]
  %v156 = vld [vmem:[%s1 + $0x340] sm:$0xff]
  %v157 = vld [vmem:[%s1 + $0x348] sm:$0xff]
  %v158 = vld [vmem:[%s1 + $0x350] sm:$0xff]
  %v159 = vld [vmem:[%s1 + $0x358] sm:$0xff]
  %v160 = vld [vmem:[%s1 + $0x360] sm:$0xff]
  %v161 = vld [vmem:[%s1 + $0x368] sm:$0xff]
  %v162 = vld [vmem:[%s1 + $0x370] sm:$0xff]
  %v163 = vld [vmem:[%s1 + $0x378] sm:$0xff]
  %v164 = vld [vmem:[%s1 + $0x380] sm:$0xff]
  %v165 = vld [vmem:[%s1 + $0x388] sm:$0xff]
  %v166 = vld [vmem:[%s1 + $0x390] sm:$0xff]
  %v167 = vld [vmem:[%s1 + $0x398] sm:$0xff]
  %v168 = vld [vmem:[%s1 + $0x3a0] sm:$0xff]
  %v169 = vld [vmem:[%s1 + $0x3a8] sm:$0xff]
  %v170 = vld [vmem:[%s1 + $0x3b0] sm:$0xff]
  %v171 = vld [vmem:[%s1 + $0x3b8] sm:$0xff]
  %v172 = vld [vmem:[%s1 + $0x3c0] sm:$0xff]
  %v173 = vld [vmem:[%s1 + $0x3c8] sm:$0xff]
  %v174 = vld [vmem:[%s1 + $0x3d0] sm:$0xff]
  %v175 = vld [vmem:[%s1 + $0x3d8] sm:$0xff]
  %v176 = vld [vmem:[%s1 + $0x3e0] sm:$0xff]
  %v177 = vld [vmem:[%s1 + $0x3e8] sm:$0xff]
  %v178 = vld [vmem:[%s1 + $0x3f0] sm:$0xff]
  %v179 = vld [vmem:[%s1 + $0x3f8] sm:$0xff]
  %v180 = vld [vmem:[%s1 + $0x400] sm:$0xff]
  %v181 = vld [vmem:[%s1 + $0x408] sm:$0xff]
  %v182 = vld [vmem:[%s1 + $0x410] sm:$0xff]
  %v183 = vld [vmem:[%s1 + $0x418] sm:$0xff]
  %v184 = vld [vmem:[%s1 + $0x420] sm:$0xff]
  %v185 = vld [vmem:[%s1 + $0x428] sm:$0xff]
  %v186 = vld [vmem:[%s1 + $0x430] sm:$0xff]
  %v187 = vld [vmem:[%s1 + $0x438] sm:$0xff]
  %v188 = vld [vmem:[%s1 + $0x440] sm:$0xff]
  %v189 = vld [vmem:[%s1 + $0x448] sm:$0xff]
  %v190 = vld [vmem:[%s1 + $0x450] sm:$0xff]
  %v191 = vld [vmem:[%s1 + $0x458] sm:$0xff]
  %v192 = vld [vmem:[%s1 + $0x460] sm:$0xff]
  %v193 = vld [vmem:[%s1 + $0x468] sm:$0xff]
  %v194 = vld [vmem:[%s1 + $0x470] sm:$0xff]
  %v195 = vld [vmem:[%s1 + $0x478] sm:$0xff]
  %v196 = vld [vmem:[%s1 + $0x480] sm:$0xff]
  %v197 = vld [vmem:[%s1 + $0x488] sm:$0xff]
  %v198 = vld [vmem:[%s1 + $0x490] sm:$0xff]
  %v199 = vld [vmem:[%s1 + $0x498] sm:$0xff]
  %v200 = vld [vmem:[%s1 + $0x4a0] sm:$0xff]
  %v201 = vld [vmem:[%s1 + $0x4a8] sm:$0xff]
  %v202 = vld [vmem:[%s1 + $0x4b0] sm:$0xff]
  %v203 = vld [vmem:[%s1 + $0x4b8] sm:$0xff]
  %v204 = vld [vmem:[%s1 + $0x4c0] sm:$0xff]
  %v205 = vld [vmem:[%s1 + $0x4c8] sm:$0xff]
  %v206 = vld [vmem:[%s1 + $0x4d0] sm:$0xff]
  %v207 = vld [vmem:[%s1 + $0x4d8] sm:$0xff]
  %v208 = vld [vmem:[%s1 + $0x4e0] sm:$0xff]
  %v209 = vld [vmem:[%s1 + $0x4e8] sm:$0xff]
  %v210 = vld [vmem:[%s1 + $0x4f0] sm:$0xff]
  %v211 = vld [vmem:[%s1 + $0x4f8] sm:$0xff]
  %v212 = vld [vmem:[%s1 + $0x500] sm:$0xff]
  %v213 = vld [vmem:[%s1 + $0x508] sm:$0xff]
  %v214 = vld [vmem:[%s1 + $0x510] sm:$0xff]
  %v215 = vld [vmem:[%s1 + $0x518] sm:$0xff]
  %v216 = vld [vmem:[%s1 + $0x520] sm:$0xff]
  %v217 = vld [vmem:[%s1 + $0x528] sm:$0xff]
  %v218 = vld [vmem:[%s1 + $0x530] sm:$0xff]
  %v219 = vld [vmem:[%s1 + $0x538] sm:$0xff]
  %v220 = vld [vmem:[%s1 + $0x540] sm:$0xff]
  %v221 = vld [vmem:[%s1 + $0x548] sm:$0xff]
  %v222 = vld [vmem:[%s1 + $0x550] sm:$0xff]
  %v223 = vld [vmem:[%s1 + $0x558] sm:$0xff]
  %v224 = vld [vmem:[%s1 + $0x560] sm:$0xff]
  %v225 = vld [vmem:[%s1 + $0x568] sm:$0xff]
  %v226 = vld [vmem:[%s1 + $0x570] sm:$0xff]
  %v227 = vld [vmem:[%s1 + $0x578] sm:$0xff]
  %v228 = vld [vmem:[%s1 + $0x580] sm:$0xff]
  %v229 = vld [vmem:[%s1 + $0x588] sm:$0xff]
  %v230 = vld [vmem:[%s1 + $0x590] sm:$0xff]
  %v231 = vld [vmem:[%s1 + $0x598] sm:$0xff]
  %v232 = vld [vmem:[%s1 + $0x5a0] sm:$0xff]
  %v233 = vld [vmem:[%s1 + $0x5a8] sm:$0xff]
  %v234 = vld [vmem:[%s1 + $0x5b0] sm:$0xff]
  %v235 = vld [vmem:[%s1 + $0x5b8] sm:$0xff]
  %v236 = vld [vmem:[%s1 + $0x5c0] sm:$0xff]
  %v237 = vld [vmem:[%s1 + $0x5c8] sm:$0xff]
  %v238 = vld [vmem:[%s1 + $0x5d0] sm:$0xff]
  %v239 = vld [vmem:[%s1 + $0x5d8] sm:$0xff]
  %v240 = vld [vmem:[%s1 + $0x5e0] sm:$0xff]
  %v241 = vld [vmem:[%s1 + $0x5e8] sm:$0xff]
  %v242 = vld [vmem:[%s1 + $0x5f0] sm:$0xff]
  %v243 = vld [vmem:[%s1 + $0x5f8] sm:$0xff]
  %v244 = vld [vmem:[%s1 + $0x600] sm:$0xff]
  %v245 = vld [vmem:[%s1 + $0x608] sm:$0xff]
  %v246 = vld [vmem:[%s1 + $0x610] sm:$0xff]
  %v247 = vld [vmem:[%s1 + $0x618] sm:$0xff]
  %v248 = vld [vmem:[%s1 + $0x620] sm:$0xff]
  %v249 = vld [vmem:[%s1 + $0x628] sm:$0xff]
  %v250 = vld [vmem:[%s1 + $0x630] sm:$0xff]
  %v251 = vld [vmem:[%s1 + $0x638] sm:$0xff]
  %v252 = vld [vmem:[%s1 + $0x640] sm:$0xff]
  %v253 = vld [vmem:[%s1 + $0x648] sm:$0xff]
  %v254 = vld [vmem:[%s1 + $0x650] sm:$0xff]
  %v255 = vld [vmem:[%s1 + $0x658] sm:$0xff]
  %v256 = vld [vmem:[%s1 + $0x660] sm:$0xff]
  %v257 = vld [vmem:[%s1 + $0x668] sm:$0xff]
  %v258 = vld [vmem:[%s1 + $0x670] sm:$0xff]
  %v259 = vld [vmem:[%s1 + $0x678] sm:$0xff]
  %v260 = vld [vmem:[%s1 + $0x680] sm:$0xff]
  %v261 = vld [vmem:[%s1 + $0x688] sm:$0xff]
  %v262 = vld [vmem:[%s1 + $0x690] sm:$0xff]
  %v263 = vld [vmem:[%s1 + $0x698] sm:$0xff]
  %v264 = vld [vmem:[%s1 + $0x6a0] sm:$0xff]
  %v265 = vld [vmem:[%s1 + $0x6a8] sm:$0xff]
  %v266 = vld [vmem:[%s1 + $0x6b0] sm:$0xff]
  %v267 = vld [vmem:[%s1 + $0x6b8] sm:$0xff]
  %v268 = vld [vmem:[%s1 + $0x6c0] sm:$0xff]
  %v269 = vld [vmem:[%s1 + $0x6c8] sm:$0xff]
  %v270 = vld [vmem:[%s1 + $0x6d0] sm:$0xff]
  %v271 = vld [vmem:[%s1 + $0x6d8] sm:$0xff]
  %v272 = vld [vmem:[%s1 + $0x6e0] sm:$0xff]
  %v273 = vld [vmem:[%s1 + $0x6e8] sm:$0xff]
  %v274 = vld [vmem:[%s1 + $0x6f0] sm:$0xff]
  %v275 = vld [vmem:[%s1 + $0x6f8] sm:$0xff]
  %v276 = vld [vmem:[%s1 + $0x700] sm:$0xff]
  %v277 = vld [vmem:[%s1 + $0x708] sm:$0xff]
  %v278 = vld [vmem:[%s1 + $0x710] sm:$0xff]
  %v279 = vld [vmem:[%s1 + $0x718] sm:$0xff]
  %v280 = vld [vmem:[%s1 + $0x720] sm:$0xff]
  %v281 = vld [vmem:[%s1 + $0x728] sm:$0xff]
  %v282 = vld [vmem:[%s1 + $0x730] sm:$0xff]
  %v283 = vld [vmem:[%s1 + $0x738] sm:$0xff]
  %v284 = vld [vmem:[%s1 + $0x740] sm:$0xff]
  %v285 = vld [vmem:[%s1 + $0x748] sm:$0xff]
  %v286 = vld [vmem:[%s1 + $0x750] sm:$0xff]
  %v287 = vld [vmem:[%s1 + $0x758] sm:$0xff]
  %v288 = vld [vmem:[%s1 + $0x760] sm:$0xff]
  %v289 = vld [vmem:[%s1 + $0x768] sm:$0xff]
  %v290 = vld [vmem:[%s1 + $0x770] sm:$0xff]
  %v291 = vld [vmem:[%s1 + $0x778] sm:$0xff]
  %v292 = vld [vmem:[%s1 + $0x780] sm:$0xff]
  %v293 = vld [vmem:[%s1 + $0x788] sm:$0xff]
  %v294 = vld [vmem:[%s1 + $0x790] sm:$0xff]
  %v295 = vld [vmem:[%s1 + $0x798] sm:$0xff]
  %v296 = vld [vmem:[%s1 + $0x7a0] sm:$0xff]
  %v297 = vld [vmem:[%s1 + $0x7a8] sm:$0xff]
  %v298 = vld [vmem:[%s1 + $0x7b0] sm:$0xff]
  %v299 = vld [vmem:[%s1 + $0x7b8] sm:$0xff]
  %v300 = vld [vmem:[%s1 + $0x7c0] sm:$0xff]
  %v301 = vld [vmem:[%s1 + $0x7c8] sm:$0xff]
  %v302 = vld [vmem:[%s1 + $0x7d0] sm:$0xff]
  %v303 = vld [vmem:[%s1 + $0x7d8] sm:$0xff]
  %v304 = vld [vmem:[%s1 + $0x7e0] sm:$0xff]
  %v305 = vld [vmem:[%s1 + $0x7e8] sm:$0xff]
  %v306 = vld [vmem:[%s1 + $0x7f0] sm:$0xff]
  %v307 = vld [vmem:[%s1 + $0x7f8] sm:$0xff]
  %v308 = vld [vmem:[%s1 + $0x800] sm:$0xff]
  %v309 = vld [vmem:[%s1 + $0x808] sm:$0xff]
  %v310 = vld [vmem:[%s1 + $0x810] sm:$0xff]
  %v311 = vld [vmem:[%s1 + $0x818] sm:$0xff]
  %v312 = vld [vmem:[%s1 + $0x820] sm:$0xff]
  %v313 = vld [vmem:[%s1 + $0x828] sm:$0xff]
  %v314 = vld [vmem:[%s1 + $0x830] sm:$0xff]
  %v315 = vld [vmem:[%s1 + $0x838] sm:$0xff]
  %v316 = vld [vmem:[%s1 + $0x840] sm:$0xff]
  %v317 = vld [vmem:[%s1 + $0x848] sm:$0xff]
  %v318 = vld [vmem:[%s1 + $0x850] sm:$0xff]
  %v319 = vld [vmem:[%s1 + $0x858] sm:$0xff]
  %v320 = vld [vmem:[%s1 + $0x860] sm:$0xff]
  %v321 = vld [vmem:[%s1 + $0x868] sm:$0xff]
  %v322 = vld [vmem:[%s1 + $0x870] sm:$0xff]
  %v323 = vld [vmem:[%s1 + $0x878] sm:$0xff]
  %v324 = vld [vmem:[%s1 + $0x880] sm:$0xff]
  %v325 = vld [vmem:[%s1 + $0x888] sm:$0xff]
  %v326 = vld [vmem:[%s1 + $0x890] sm:$0xff]
  %v327 = vld [vmem:[%s1 + $0x898] sm:$0xff]
  %v328 = vld [vmem:[%s1 + $0x8a0] sm:$0xff]
  %v329 = vld [vmem:[%s1 + $0x8a8] sm:$0xff]
  %v330 = vld [vmem:[%s1 + $0x8b0] sm:$0xff]
  %v331 = vld [vmem:[%s1 + $0x8b8] sm:$0xff]
  %v332 = vld [vmem:[%s1 + $0x8c0] sm:$0xff]
  %v333 = vld [vmem:[%s1 + $0x8c8] sm:$0xff]
  %v334 = vld [vmem:[%s1 + $0x8d0] sm:$0xff]
  %v335 = vld [vmem:[%s1 + $0x8d8] sm:$0xff]
  %v336 = vld [vmem:[%s1 + $0x8e0] sm:$0xff]
  %v337 = vld [vmem:[%s1 + $0x8e8] sm:$0xff]
  %v338 = vld [vmem:[%s1 + $0x8f0] sm:$0xff]
  %v339 = vld [vmem:[%s1 + $0x8f8] sm:$0xff]
  %v340 = vld [vmem:[%s1 + $0x900] sm:$0xff]
  %v341 = vld [vmem:[%s1 + $0x908] sm:$0xff]
  %v342 = vld [vmem:[%s1 + $0x910] sm:$0xff]
  %v343 = vld [vmem:[%s1 + $0x918] sm:$0xff]
  %v344 = vld [vmem:[%s1 + $0x920] sm:$0xff]
  %v345 = vld [vmem:[%s1 + $0x928] sm:$0xff]
  %v346 = vld [vmem:[%s1 + $0x930] sm:$0xff]
  %v347 = vld [vmem:[%s1 + $0x938] sm:$0xff]
  %v348 = vld [vmem:[%s1 + $0x940] sm:$0xff]
  %v349 = vld [vmem:[%s1 + $0x948] sm:$0xff]
  %v350 = vld [vmem:[%s1 + $0x950] sm:$0xff]
  %v351 = vld [vmem:[%s1 + $0x958] sm:$0xff]
  %v352 = vld [vmem:[%s1 + $0x960] sm:$0xff]
  %v353 = vld [vmem:[%s1 + $0x968] sm:$0xff]
  %v354 = vld [vmem:[%s1 + $0x970] sm:$0xff]
  %v355 = vld [vmem:[%s1 + $0x978] sm:$0xff]
  %v356 = vld [vmem:[%s1 + $0x980] sm:$0xff]
  %v357 = vld [vmem:[%s1 + $0x988] sm:$0xff]
  %v358 = vld [vmem:[%s1 + $0x990] sm:$0xff]
  %v359 = vld [vmem:[%s1 + $0x998] sm:$0xff]
  %v360 = vld [vmem:[%s1 + $0x9a0] sm:$0xff]
  %v361 = vld [vmem:[%s1 + $0x9a8] sm:$0xff]
  %v362 = vld [vmem:[%s1 + $0x9b0] sm:$0xff]
  %v363 = vld [vmem:[%s1 + $0x9b8] sm:$0xff]
  %v364 = vld [vmem:[%s1 + $0x9c0] sm:$0xff]
  %v365 = vld [vmem:[%s1 + $0x9c8] sm:$0xff]
  %v366 = vld [vmem:[%s1 + $0x9d0] sm:$0xff]
  %v367 = vld [vmem:[%s1 + $0x9d8] sm:$0xff]
  %v368 = vld [vmem:[%s1 + $0x9e0] sm:$0xff]
  %v369 = vld [vmem:[%s1 + $0x9e8] sm:$0xff]
  %v370 = vld [vmem:[%s1 + $0x9f0] sm:$0xff]
  %v371 = vld [vmem:[%s1 + $0x9f8] sm:$0xff]
  %v372 = vld [vmem:[%s1 + $0xa00] sm:$0xff]
  %v373 = vld [vmem:[%s1 + $0xa08] sm:$0xff]
  %v374 = vld [vmem:[%s1 + $0xa10] sm:$0xff]
  %v375 = vld [vmem:[%s1 + $0xa18] sm:$0xff]
  %v376 = vld [vmem:[%s1 + $0xa20] sm:$0xff]
  %v377 = vld [vmem:[%s1 + $0xa28] sm:$0xff]
  %v378 = vld [vmem:[%s1 + $0xa30] sm:$0xff]
  %v379 = vld [vmem:[%s1 + $0xa38] sm:$0xff]
  %v380 = vld [vmem:[%s1 + $0xa40] sm:$0xff]
  %v381 = vld [vmem:[%s1 + $0xa48] sm:$0xff]
  %v382 = vld [vmem:[%s1 + $0xa50] sm:$0xff]
  %v383 = vld [vmem:[%s1 + $0xa58] sm:$0xff]
  %v384 = vld [vmem:[%s1 + $0xa60] sm:$0xff]
  %v385 = vld [vmem:[%s1 + $0xa68] sm:$0xff]
  %v386 = vld [vmem:[%s1 + $0xa70] sm:$0xff]
  %v387 = vld [vmem:[%s1 + $0xa78] sm:$0xff]
  %v388 = vld [vmem:[%s1 + $0xa80] sm:$0xff]
  %v389 = vld [vmem:[%s1 + $0xa88] sm:$0xff]
  %v390 = vld [vmem:[%s1 + $0xa90] sm:$0xff]
  %v391 = vld [vmem:[%s1 + $0xa98] sm:$0xff]
  %v392 = vld [vmem:[%s1 + $0xaa0] sm:$0xff]
  %v393 = vld [vmem:[%s1 + $0xaa8] sm:$0xff]
  %v394 = vld [vmem:[%s1 + $0xab0] sm:$0xff]
  %v395 = vld [vmem:[%s1 + $0xab8] sm:$0xff]
  %v396 = vld [vmem:[%s1 + $0xac0] sm:$0xff]
  %v397 = vld [vmem:[%s1 + $0xac8] sm:$0xff]
  %v398 = vld [vmem:[%s1 + $0xad0] sm:$0xff]
  %v399 = vld [vmem:[%s1 + $0xad8] sm:$0xff]
  %v400 = vld [vmem:[%s1 + $0xae0] sm:$0xff]
  %v401 = vld [vmem:[%s1 + $0xae8] sm:$0xff]
  %v402 = vld [vmem:[%s1 + $0xaf0] sm:$0xff]
  %v403 = vld [vmem:[%s1 + $0xaf8] sm:$0xff]
  %v404 = vld [vmem:[%s1 + $0xb00] sm:$0xff]
  %v405 = vld [vmem:[%s1 + $0xb08] sm:$0xff]
  %v406 = vld [vmem:[%s1 + $0xb10] sm:$0xff]
  %v407 = vld [vmem:[%s1 + $0xb18] sm:$0xff]
  %v408 = vld [vmem:[%s1 + $0xb20] sm:$0xff]
  %v409 = vld [vmem:[%s1 + $0xb28] sm:$0xff]
  %v410 = vld [vmem:[%s1 + $0xb30] sm:$0xff]
  %v411 = vld [vmem:[%s1 + $0xb38] sm:$0xff]
  %v412 = vld [vmem:[%s1 + $0xb40] sm:$0xff]
  %v413 = vld [vmem:[%s1 + $0xb48] sm:$0xff]
  %v414 = vld [vmem:[%s1 + $0xb50] sm:$0xff]
  %v415 = vld [vmem:[%s1 + $0xb58] sm:$0xff]
  %v416 = vld [vmem:[%s1 + $0xb60] sm:$0xff]
  %v417 = vld [vmem:[%s1 + $0xb68] sm:$0xff]
  %v418 = vld [vmem:[%s1 + $0xb70] sm:$0xff]
  %v419 = vld [vmem:[%s1 + $0xb78] sm:$0xff]
  %v420 = vld [vmem:[%s1 + $0xb80] sm:$0xff]
  %v421 = vld [vmem:[%s1 + $0xb88] sm:$0xff]
  %v422 = vld [vmem:[%s1 + $0xb90] sm:$0xff]
  %v423 = vld [vmem:[%s1 + $0xb98] sm:$0xff]
  %v424 = vld [vmem:[%s1 + $0xba0] sm:$0xff]
  %v425 = vld [vmem:[%s1 + $0xba8] sm:$0xff]
  %v426 = vld [vmem:[%s1 + $0xbb0] sm:$0xff]
  %v427 = vld [vmem:[%s1 + $0xbb8] sm:$0xff]
  %v428 = vld [vmem:[%s1 + $0xbc0] sm:$0xff]
  %v429 = vld [vmem:[%s1 + $0xbc8] sm:$0xff]
  %v430 = vld [vmem:[%s1 + $0xbd0] sm:$0xff]
  %v431 = vld [vmem:[%s1 + $0xbd8] sm:$0xff]
  %v432 = vld [vmem:[%s1 + $0xbe0] sm:$0xff]
  %v433 = vld [vmem:[%s1 + $0xbe8] sm:$0xff]
  %v434 = vld [vmem:[%s1 + $0xbf0] sm:$0xff]
  %v435 = vld [vmem:[%s1 + $0xbf8] sm:$0xff]
  %v436 = vld [vmem:[%s1 + $0xc00] sm:$0xff]
  %v437 = vld [vmem:[%s1 + $0xc08] sm:$0xff]
  %v438 = vld [vmem:[%s1 + $0xc10] sm:$0xff]
  %v439 = vld [vmem:[%s1 + $0xc18] sm:$0xff]
  %v440 = vld [vmem:[%s1 + $0xc20] sm:$0xff]
  %v441 = vld [vmem:[%s1 + $0xc28] sm:$0xff]
  %v442 = vld [vmem:[%s1 + $0xc30] sm:$0xff]
  %v443 = vld [vmem:[%s1 + $0xc38] sm:$0xff]
  %v444 = vld [vmem:[%s1 + $0xc40] sm:$0xff]
  %v445 = vld [vmem:[%s1 + $0xc48] sm:$0xff]
  %v446 = vld [vmem:[%s1 + $0xc50] sm:$0xff]
  %v447 = vld [vmem:[%s1 + $0xc58] sm:$0xff]
  %v448 = vld [vmem:[%s1 + $0xc60] sm:$0xff]
  %v449 = vld [vmem:[%s1 + $0xc68] sm:$0xff]
  %v450 = vld [vmem:[%s1 + $0xc70] sm:$0xff]
  %v451 = vld [vmem:[%s1 + $0xc78] sm:$0xff]
  %v452 = vld [vmem:[%s1 + $0xc80] sm:$0xff]
  %v453 = vld [vmem:[%s1 + $0xc88] sm:$0xff]
  %v454 = vld [vmem:[%s1 + $0xc90] sm:$0xff]
  %v455 = vld [vmem:[%s1 + $0xc98] sm:$0xff]
  %v456 = vld [vmem:[%s1 + $0xca0] sm:$0xff]
  %v457 = vld [vmem:[%s1 + $0xca8] sm:$0xff]
  %v458 = vld [vmem:[%s1 + $0xcb0] sm:$0xff]
  %v459 = vld [vmem:[%s1 + $0xcb8] sm:$0xff]
  %v460 = vld [vmem:[%s1 + $0xcc0] sm:$0xff]
  %v461 = vld [vmem:[%s1 + $0xcc8] sm:$0xff]
  %v462 = vld [vmem:[%s1 + $0xcd0] sm:$0xff]
  %v463 = vld [vmem:[%s1 + $0xcd8] sm:$0xff]
  %v464 = vld [vmem:[%s1 + $0xce0] sm:$0xff]
  %v465 = vld [vmem:[%s1 + $0xce8] sm:$0xff]
  %v466 = vld [vmem:[%s1 + $0xcf0] sm:$0xff]
  %v467 = vld [vmem:[%s1 + $0xcf8] sm:$0xff]
  %v468 = vld [vmem:[%s1 + $0xd00] sm:$0xff]
  %v469 = vld [vmem:[%s1 + $0xd08] sm:$0xff]
  %v470 = vld [vmem:[%s1 + $0xd10] sm:$0xff]
  %v471 = vld [vmem:[%s1 + $0xd18] sm:$0xff]
  %v472 = vld [vmem:[%s1 + $0xd20] sm:$0xff]
  %v473 = vld [vmem:[%s1 + $0xd28] sm:$0xff]
  %v474 = vld [vmem:[%s1 + $0xd30] sm:$0xff]
  %v475 = vld [vmem:[%s1 + $0xd38] sm:$0xff]
  %v476 = vld [vmem:[%s1 + $0xd40] sm:$0xff]
  %v477 = vld [vmem:[%s1 + $0xd48] sm:$0xff]
  %v478 = vld [vmem:[%s1 + $0xd50] sm:$0xff]
  %v479 = vld [vmem:[%s1 + $0xd58] sm:$0xff]
  %v480 = vld [vmem:[%s1 + $0xd60] sm:$0xff]
  %v481 = vld [vmem:[%s1 + $0xd68] sm:$0xff]
  %v482 = vld [vmem:[%s1 + $0xd70] sm:$0xff]
  %v483 = vld [vmem:[%s1 + $0xd78] sm:$0xff]
  %v484 = vld [vmem:[%s1 + $0xd80] sm:$0xff]
  %v485 = vld [vmem:[%s1 + $0xd88] sm:$0xff]
  %v486 = vld [vmem:[%s1 + $0xd90] sm:$0xff]
  %v487 = vld [vmem:[%s1 + $0xd98] sm:$0xff]
  %v488 = vld [vmem:[%s1 + $0xda0] sm:$0xff]
  %v489 = vld [vmem:[%s1 + $0xda8] sm:$0xff]
  %v490 = vld [vmem:[%s1 + $0xdb0] sm:$0xff]
  %v491 = vld [vmem:[%s1 + $0xdb8] sm:$0xff]
  %v492 = vld [vmem:[%s1 + $0xdc0] sm:$0xff]
  %v493 = vld [vmem:[%s1 + $0xdc8] sm:$0xff]
  %v494 = vld [vmem:[%s1 + $0xdd0] sm:$0xff]
  %v495 = vld [vmem:[%s1 + $0xdd8] sm:$0xff]
  %v496 = vld [vmem:[%s1 + $0xde0] sm:$0xff]
  %v497 = vld [vmem:[%s1 + $0xde8] sm:$0xff]
  %v498 = vld [vmem:[%s1 + $0xdf0] sm:$0xff]
  %v499 = vld [vmem:[%s1 + $0xdf8] sm:$0xff]
  %v500 = vld [vmem:[%s1 + $0xe00] sm:$0xff]
  %v501 = vld [vmem:[%s1 + $0xe08] sm:$0xff]
  %v502 = vld [vmem:[%s1 + $0xe10] sm:$0xff]
  %v503 = vld [vmem:[%s1 + $0xe18] sm:$0xff]
  %v504 = vld [vmem:[%s1 + $0xe20] sm:$0xff]
  %v505 = vld [vmem:[%s1 + $0xe28] sm:$0xff]
  %v506 = vld [vmem:[%s1 + $0xe30] sm:$0xff]
  %v507 = vld [vmem:[%s1 + $0xe38] sm:$0xff]
  %v508 = vld [vmem:[%s1 + $0xe40] sm:$0xff]
  %v509 = vld [vmem:[%s1 + $0xe48] sm:$0xff]
  %v510 = vld [vmem:[%s1 + $0xe50] sm:$0xff]
  %v511 = vld [vmem:[%s1 + $0xe58] sm:$0xff]
  %v512 = vld [vmem:[%s1 + $0xe60] sm:$0xff]
  %v513 = vld [vmem:[%s1 + $0xe68] sm:$0xff]
  %v514 = vld [vmem:[%s1 + $0xe70] sm:$0xff]
  %v515 = vld [vmem:[%s1 + $0xe78] sm:$0xff]
  %v516 = vld [vmem:[%s1 + $0xe80] sm:$0xff]
  %v517 = vld [vmem:[%s1 + $0xe88] sm:$0xff]
  %v518 = vld [vmem:[%s1 + $0xe90] sm:$0xff]
  %v519 = vld [vmem:[%s1 + $0xe98] sm:$0xff]
  %v520 = vld [vmem:[%s1 + $0xea0] sm:$0xff]
  %v521 = vld [vmem:[%s1 + $0xea8] sm:$0xff]
  %v522 = vld [vmem:[%s1 + $0xeb0] sm:$0xff]
  %v523 = vld [vmem:[%s1 + $0xeb8] sm:$0xff]
  %v524 = vld [vmem:[%s1 + $0xec0] sm:$0xff]
  %v525 = vld [vmem:[%s1 + $0xec8] sm:$0xff]
  %v526 = vld [vmem:[%s1 + $0xed0] sm:$0xff]
  %v527 = vld [vmem:[%s1 + $0xed8] sm:$0xff]
  %v528 = vld [vmem:[%s1 + $0xee0] sm:$0xff]
  %v529 = vld [vmem:[%s1 + $0xee8] sm:$0xff]
  %v530 = vld [vmem:[%s1 + $0xef0] sm:$0xff]
  %v531 = vld [vmem:[%s1 + $0xef8] sm:$0xff]
  %v532 = vld [vmem:[%s1 + $0xf00] sm:$0xff]
  %v533 = vld [vmem:[%s1 + $0xf08] sm:$0xff]
  %v534 = vld [vmem:[%s1 + $0xf10] sm:$0xff]
  %v535 = vld [vmem:[%s1 + $0xf18] sm:$0xff]
  %v536 = vld [vmem:[%s1 + $0xf20] sm:$0xff]
  %v537 = vld [vmem:[%s1 + $0xf28] sm:$0xff]
  %v538 = vld [vmem:[%s1 + $0xf30] sm:$0xff]
  %v539 = vld [vmem:[%s1 + $0xf38] sm:$0xff]
  %v540 = vld [vmem:[%s1 + $0xf40] sm:$0xff]
  %v541 = vld [vmem:[%s1 + $0xf48] sm:$0xff]
  %v542 = vld [vmem:[%s1 + $0xf50] sm:$0xff]
  %v543 = vld [vmem:[%s1 + $0xf58] sm:$0xff]
  %v544 = vld [vmem:[%s1 + $0xf60] sm:$0xff]
  %v545 = vld [vmem:[%s1 + $0xf68] sm:$0xff]
  %v546 = vld [vmem:[%s1 + $0xf70] sm:$0xff]
  %v547 = vld [vmem:[%s1 + $0xf78] sm:$0xff]
  %v548 = vld [vmem:[%s1 + $0xf80] sm:$0xff]
  %v549 = vld [vmem:[%s1 + $0xf88] sm:$0xff]
  %v550 = vld [vmem:[%s1 + $0xf90] sm:$0xff]
  %v551 = vld [vmem:[%s1 + $0xf98] sm:$0xff]
  %v552 = vld [vmem:[%s1 + $0xfa0] sm:$0xff]
  %v553 = vld [vmem:[%s1 + $0xfa8] sm:$0xff]
  %v554 = vld [vmem:[%s1 + $0xfb0] sm:$0xff]
  %v555 = vld [vmem:[%s1 + $0xfb8] sm:$0xff]
  %v556 = vld [vmem:[%s1 + $0xfc0] sm:$0xff]
  %v557 = vld [vmem:[%s1 + $0xfc8] sm:$0xff]
  %v558 = vld [vmem:[%s1 + $0xfd0] sm:$0xff]
  %v559 = vld [vmem:[%s1 + $0xfd8] sm:$0xff]
  %v560 = vld [vmem:[%s1 + $0xfe0] sm:$0xff]
  %v561 = vld [vmem:[%s1 + $0xfe8] sm:$0xff]
  %v562 = vld [vmem:[%s1 + $0xff0] sm:$0xff]
  %v563 = vld [vmem:[%s1 + $0xff8] sm:$0xff]
  %v564 = vld [vmem:[%s2] sm:$0x1]
  %v566 = vperm.slane %v564, 0
  %568 = vmatpush.msra.mxu0 %v67
  %569 = vmatpush.msra.mxu0 %v66
  %570 = vmatpush.msra.mxu0 %v65
  %571 = vmatpush.msra.mxu0 %v64
  %572 = vmatpush.msra.mxu0 %v63
  %573 = vmatpush.msra.mxu0 %v62
  %574 = vmatpush.msra.mxu0 %v61
  %575 = vmatpush.msra.mxu0 %v60
  %576 = vmatpush.msra.mxu0 %v59
  %577 = vmatpush.msra.mxu0 %v58
  %578 = vmatpush.msra.mxu0 %v57
  %579 = vmatpush.msra.mxu0 %v56
  %580 = vmatpush.msra.mxu0 %v55
  %581 = vmatpush.msra.mxu0 %v54
  %582 = vmatpush.msra.mxu0 %v53
  %583 = vmatpush.msra.mxu0 %v52
  %584 = vmatmul.f32.gmra.mxu0 %v20
  %v585 = vpop.f32.mrf.mxu0
  %v586 = vadd.f32 %v566, %v585
  %587 = vdwg.mxu0
  %588 = vmatpush.msra.mxu0 %v83
  %589 = vmatpush.msra.mxu0 %v82
  %590 = vmatpush.msra.mxu0 %v81
  %591 = vmatpush.msra.mxu0 %v80
  %592 = vmatpush.msra.mxu0 %v79
  %593 = vmatpush.msra.mxu0 %v78
  %594 = vmatpush.msra.mxu0 %v77
  %595 = vmatpush.msra.mxu0 %v76
  %596 = vmatpush.msra.mxu0 %v75
  %597 = vmatpush.msra.mxu0 %v74
  %598 = vmatpush.msra.mxu0 %v73
  %599 = vmatpush.msra.mxu0 %v72
  %600 = vmatpush.msra.mxu0 %v71
  %601 = vmatpush.msra.mxu0 %v70
  %602 = vmatpush.msra.mxu0 %v69
  %603 = vmatpush.msra.mxu0 %v68
  %604 = vmatmul.f32.gmra.mxu0 %v21
  %v605 = vpop.f32.mrf.mxu0
  %v606 = vadd.f32 %v586, %v605
  %607 = vdwg.mxu0
  %608 = vmatpush.msra.mxu0 %v99
  %609 = vmatpush.msra.mxu0 %v98
  %610 = vmatpush.msra.mxu0 %v97
  %611 = vmatpush.msra.mxu0 %v96
  %612 = vmatpush.msra.mxu0 %v95
  %613 = vmatpush.msra.mxu0 %v94
  %614 = vmatpush.msra.mxu0 %v93
  %615 = vmatpush.msra.mxu0 %v92
  %616 = vmatpush.msra.mxu0 %v91
  %617 = vmatpush.msra.mxu0 %v90
  %618 = vmatpush.msra.mxu0 %v89
  %619 = vmatpush.msra.mxu0 %v88
  %620 = vmatpush.msra.mxu0 %v87
  %621 = vmatpush.msra.mxu0 %v86
  %622 = vmatpush.msra.mxu0 %v85
  %623 = vmatpush.msra.mxu0 %v84
  %624 = vmatmul.f32.gmra.mxu0 %v22
  %v625 = vpop.f32.mrf.mxu0
  %v626 = vadd.f32 %v606, %v625
  %627 = vdwg.mxu0
  %628 = vmatpush.msra.mxu0 %v115
  %629 = vmatpush.msra.mxu0 %v114
  %630 = vmatpush.msra.mxu0 %v113
  %631 = vmatpush.msra.mxu0 %v112
  %632 = vmatpush.msra.mxu0 %v111
  %633 = vmatpush.msra.mxu0 %v110
  %634 = vmatpush.msra.mxu0 %v109
  %635 = vmatpush.msra.mxu0 %v108
  %636 = vmatpush.msra.mxu0 %v107
  %637 = vmatpush.msra.mxu0 %v106
  %638 = vmatpush.msra.mxu0 %v105
  %639 = vmatpush.msra.mxu0 %v104
  %640 = vmatpush.msra.mxu0 %v103
  %641 = vmatpush.msra.mxu0 %v102
  %642 = vmatpush.msra.mxu0 %v101
  %643 = vmatpush.msra.mxu0 %v100
  %644 = vmatmul.f32.gmra.mxu0 %v23
  %v645 = vpop.f32.mrf.mxu0
  %v646 = vadd.f32 %v626, %v645
  %647 = vdwg.mxu0
  %648 = vmatpush.msra.mxu0 %v131
  %649 = vmatpush.msra.mxu0 %v130
  %650 = vmatpush.msra.mxu0 %v129
  %651 = vmatpush.msra.mxu0 %v128
  %652 = vmatpush.msra.mxu0 %v127
  %653 = vmatpush.msra.mxu0 %v126
  %654 = vmatpush.msra.mxu0 %v125
  %655 = vmatpush.msra.mxu0 %v124
  %656 = vmatpush.msra.mxu0 %v123
  %657 = vmatpush.msra.mxu0 %v122
  %658 = vmatpush.msra.mxu0 %v121
  %659 = vmatpush.msra.mxu0 %v120
  %660 = vmatpush.msra.mxu0 %v119
  %661 = vmatpush.msra.mxu0 %v118
  %662 = vmatpush.msra.mxu0 %v117
  %663 = vmatpush.msra.mxu0 %v116
  %664 = vmatmul.f32.gmra.mxu0 %v24
  %v665 = vpop.f32.mrf.mxu0
  %v666 = vadd.f32 %v646, %v665
  %667 = vdwg.mxu0
  %668 = vmatpush.msra.mxu0 %v147
  %669 = vmatpush.msra.mxu0 %v146
  %670 = vmatpush.msra.mxu0 %v145
  %671 = vmatpush.msra.mxu0 %v144
  %672 = vmatpush.msra.mxu0 %v143
  %673 = vmatpush.msra.mxu0 %v142
  %674 = vmatpush.msra.mxu0 %v141
  %675 = vmatpush.msra.mxu0 %v140
  %676 = vmatpush.msra.mxu0 %v139
  %677 = vmatpush.msra.mxu0 %v138
  %678 = vmatpush.msra.mxu0 %v137
  %679 = vmatpush.msra.mxu0 %v136
  %680 = vmatpush.msra.mxu0 %v135
  %681 = vmatpush.msra.mxu0 %v134
  %682 = vmatpush.msra.mxu0 %v133
  %683 = vmatpush.msra.mxu0 %v132
  %684 = vmatmul.f32.gmra.mxu0 %v25
  %v685 = vpop.f32.mrf.mxu0
  %v686 = vadd.f32 %v666, %v685
  %687 = vdwg.mxu0
  %688 = vmatpush.msra.mxu0 %v163
  %689 = vmatpush.msra.mxu0 %v162
  %690 = vmatpush.msra.mxu0 %v161
  %691 = vmatpush.msra.mxu0 %v160
  %692 = vmatpush.msra.mxu0 %v159
  %693 = vmatpush.msra.mxu0 %v158
  %694 = vmatpush.msra.mxu0 %v157
  %695 = vmatpush.msra.mxu0 %v156
  %696 = vmatpush.msra.mxu0 %v155
  %697 = vmatpush.msra.mxu0 %v154
  %698 = vmatpush.msra.mxu0 %v153
  %699 = vmatpush.msra.mxu0 %v152
  %700 = vmatpush.msra.mxu0 %v151
  %701 = vmatpush.msra.mxu0 %v150
  %702 = vmatpush.msra.mxu0 %v149
  %703 = vmatpush.msra.mxu0 %v148
  %704 = vmatmul.f32.gmra.mxu0 %v26
  %v705 = vpop.f32.mrf.mxu0
  %v706 = vadd.f32 %v686, %v705
  %707 = vdwg.mxu0
  %708 = vmatpush.msra.mxu0 %v179
  %709 = vmatpush.msra.mxu0 %v178
  %710 = vmatpush.msra.mxu0 %v177
  %711 = vmatpush.msra.mxu0 %v176
  %712 = vmatpush.msra.mxu0 %v175
  %713 = vmatpush.msra.mxu0 %v174
  %714 = vmatpush.msra.mxu0 %v173
  %715 = vmatpush.msra.mxu0 %v172
  %716 = vmatpush.msra.mxu0 %v171
  %717 = vmatpush.msra.mxu0 %v170
  %718 = vmatpush.msra.mxu0 %v169
  %719 = vmatpush.msra.mxu0 %v168
  %720 = vmatpush.msra.mxu0 %v167
  %721 = vmatpush.msra.mxu0 %v166
  %722 = vmatpush.msra.mxu0 %v165
  %723 = vmatpush.msra.mxu0 %v164
  %724 = vmatmul.f32.gmra.mxu0 %v27
  %v725 = vpop.f32.mrf.mxu0
  %v726 = vadd.f32 %v706, %v725
  %727 = vdwg.mxu0
  %728 = vmatpush.msra.mxu0 %v195
  %729 = vmatpush.msra.mxu0 %v194
  %730 = vmatpush.msra.mxu0 %v193
  %731 = vmatpush.msra.mxu0 %v192
  %732 = vmatpush.msra.mxu0 %v191
  %733 = vmatpush.msra.mxu0 %v190
  %734 = vmatpush.msra.mxu0 %v189
  %735 = vmatpush.msra.mxu0 %v188
  %736 = vmatpush.msra.mxu0 %v187
  %737 = vmatpush.msra.mxu0 %v186
  %738 = vmatpush.msra.mxu0 %v185
  %739 = vmatpush.msra.mxu0 %v184
  %740 = vmatpush.msra.mxu0 %v183
  %741 = vmatpush.msra.mxu0 %v182
  %742 = vmatpush.msra.mxu0 %v181
  %743 = vmatpush.msra.mxu0 %v180
  %744 = vmatmul.f32.gmra.mxu0 %v28
  %v745 = vpop.f32.mrf.mxu0
  %v746 = vadd.f32 %v726, %v745
  %747 = vdwg.mxu0
  %748 = vmatpush.msra.mxu0 %v211
  %749 = vmatpush.msra.mxu0 %v210
  %750 = vmatpush.msra.mxu0 %v209
  %751 = vmatpush.msra.mxu0 %v208
  %752 = vmatpush.msra.mxu0 %v207
  %753 = vmatpush.msra.mxu0 %v206
  %754 = vmatpush.msra.mxu0 %v205
  %755 = vmatpush.msra.mxu0 %v204
  %756 = vmatpush.msra.mxu0 %v203
  %757 = vmatpush.msra.mxu0 %v202
  %758 = vmatpush.msra.mxu0 %v201
  %759 = vmatpush.msra.mxu0 %v200
  %760 = vmatpush.msra.mxu0 %v199
  %761 = vmatpush.msra.mxu0 %v198
  %762 = vmatpush.msra.mxu0 %v197
  %763 = vmatpush.msra.mxu0 %v196
  %764 = vmatmul.f32.gmra.mxu0 %v29
  %v765 = vpop.f32.mrf.mxu0
  %v766 = vadd.f32 %v746, %v765
  %767 = vdwg.mxu0
  %768 = vmatpush.msra.mxu0 %v227
  %769 = vmatpush.msra.mxu0 %v226
  %770 = vmatpush.msra.mxu0 %v225
  %771 = vmatpush.msra.mxu0 %v224
  %772 = vmatpush.msra.mxu0 %v223
  %773 = vmatpush.msra.mxu0 %v222
  %774 = vmatpush.msra.mxu0 %v221
  %775 = vmatpush.msra.mxu0 %v220
  %776 = vmatpush.msra.mxu0 %v219
  %777 = vmatpush.msra.mxu0 %v218
  %778 = vmatpush.msra.mxu0 %v217
  %779 = vmatpush.msra.mxu0 %v216
  %780 = vmatpush.msra.mxu0 %v215
  %781 = vmatpush.msra.mxu0 %v214
  %782 = vmatpush.msra.mxu0 %v213
  %783 = vmatpush.msra.mxu0 %v212
  %784 = vmatmul.f32.gmra.mxu0 %v30
  %v785 = vpop.f32.mrf.mxu0
  %v786 = vadd.f32 %v766, %v785
  %787 = vdwg.mxu0
  %788 = vmatpush.msra.mxu0 %v243
  %789 = vmatpush.msra.mxu0 %v242
  %790 = vmatpush.msra.mxu0 %v241
  %791 = vmatpush.msra.mxu0 %v240
  %792 = vmatpush.msra.mxu0 %v239
  %793 = vmatpush.msra.mxu0 %v238
  %794 = vmatpush.msra.mxu0 %v237
  %795 = vmatpush.msra.mxu0 %v236
  %796 = vmatpush.msra.mxu0 %v235
  %797 = vmatpush.msra.mxu0 %v234
  %798 = vmatpush.msra.mxu0 %v233
  %799 = vmatpush.msra.mxu0 %v232
  %800 = vmatpush.msra.mxu0 %v231
  %801 = vmatpush.msra.mxu0 %v230
  %802 = vmatpush.msra.mxu0 %v229
  %803 = vmatpush.msra.mxu0 %v228
  %804 = vmatmul.f32.gmra.mxu0 %v31
  %v805 = vpop.f32.mrf.mxu0
  %v806 = vadd.f32 %v786, %v805
  %807 = vdwg.mxu0
  %808 = vmatpush.msra.mxu0 %v259
  %809 = vmatpush.msra.mxu0 %v258
  %810 = vmatpush.msra.mxu0 %v257
  %811 = vmatpush.msra.mxu0 %v256
  %812 = vmatpush.msra.mxu0 %v255
  %813 = vmatpush.msra.mxu0 %v254
  %814 = vmatpush.msra.mxu0 %v253
  %815 = vmatpush.msra.mxu0 %v252
  %816 = vmatpush.msra.mxu0 %v251
  %817 = vmatpush.msra.mxu0 %v250
  %818 = vmatpush.msra.mxu0 %v249
  %819 = vmatpush.msra.mxu0 %v248
  %820 = vmatpush.msra.mxu0 %v247
  %821 = vmatpush.msra.mxu0 %v246
  %822 = vmatpush.msra.mxu0 %v245
  %823 = vmatpush.msra.mxu0 %v244
  %824 = vmatmul.f32.gmra.mxu0 %v32
  %v825 = vpop.f32.mrf.mxu0
  %v826 = vadd.f32 %v806, %v825
  %827 = vdwg.mxu0
  %828 = vmatpush.msra.mxu0 %v275
  %829 = vmatpush.msra.mxu0 %v274
  %830 = vmatpush.msra.mxu0 %v273
  %831 = vmatpush.msra.mxu0 %v272
  %832 = vmatpush.msra.mxu0 %v271
  %833 = vmatpush.msra.mxu0 %v270
  %834 = vmatpush.msra.mxu0 %v269
  %835 = vmatpush.msra.mxu0 %v268
  %836 = vmatpush.msra.mxu0 %v267
  %837 = vmatpush.msra.mxu0 %v266
  %838 = vmatpush.msra.mxu0 %v265
  %839 = vmatpush.msra.mxu0 %v264
  %840 = vmatpush.msra.mxu0 %v263
  %841 = vmatpush.msra.mxu0 %v262
  %842 = vmatpush.msra.mxu0 %v261
  %843 = vmatpush.msra.mxu0 %v260
  %844 = vmatmul.f32.gmra.mxu0 %v33
  %v845 = vpop.f32.mrf.mxu0
  %v846 = vadd.f32 %v826, %v845
  %847 = vdwg.mxu0
  %848 = vmatpush.msra.mxu0 %v291
  %849 = vmatpush.msra.mxu0 %v290
  %850 = vmatpush.msra.mxu0 %v289
  %851 = vmatpush.msra.mxu0 %v288
  %852 = vmatpush.msra.mxu0 %v287
  %853 = vmatpush.msra.mxu0 %v286
  %854 = vmatpush.msra.mxu0 %v285
  %855 = vmatpush.msra.mxu0 %v284
  %856 = vmatpush.msra.mxu0 %v283
  %857 = vmatpush.msra.mxu0 %v282
  %858 = vmatpush.msra.mxu0 %v281
  %859 = vmatpush.msra.mxu0 %v280
  %860 = vmatpush.msra.mxu0 %v279
  %861 = vmatpush.msra.mxu0 %v278
  %862 = vmatpush.msra.mxu0 %v277
  %863 = vmatpush.msra.mxu0 %v276
  %864 = vmatmul.f32.gmra.mxu0 %v34
  %v865 = vpop.f32.mrf.mxu0
  %v866 = vadd.f32 %v846, %v865
  %867 = vdwg.mxu0
  %868 = vmatpush.msra.mxu0 %v307
  %869 = vmatpush.msra.mxu0 %v306
  %870 = vmatpush.msra.mxu0 %v305
  %871 = vmatpush.msra.mxu0 %v304
  %872 = vmatpush.msra.mxu0 %v303
  %873 = vmatpush.msra.mxu0 %v302
  %874 = vmatpush.msra.mxu0 %v301
  %875 = vmatpush.msra.mxu0 %v300
  %876 = vmatpush.msra.mxu0 %v299
  %877 = vmatpush.msra.mxu0 %v298
  %878 = vmatpush.msra.mxu0 %v297
  %879 = vmatpush.msra.mxu0 %v296
  %880 = vmatpush.msra.mxu0 %v295
  %881 = vmatpush.msra.mxu0 %v294
  %882 = vmatpush.msra.mxu0 %v293
  %883 = vmatpush.msra.mxu0 %v292
  %884 = vmatmul.f32.gmra.mxu0 %v35
  %v885 = vpop.f32.mrf.mxu0
  %v886 = vadd.f32 %v866, %v885
  %887 = vdwg.mxu0
  %888 = vmatpush.msra.mxu0 %v323
  %889 = vmatpush.msra.mxu0 %v322
  %890 = vmatpush.msra.mxu0 %v321
  %891 = vmatpush.msra.mxu0 %v320
  %892 = vmatpush.msra.mxu0 %v319
  %893 = vmatpush.msra.mxu0 %v318
  %894 = vmatpush.msra.mxu0 %v317
  %895 = vmatpush.msra.mxu0 %v316
  %896 = vmatpush.msra.mxu0 %v315
  %897 = vmatpush.msra.mxu0 %v314
  %898 = vmatpush.msra.mxu0 %v313
  %899 = vmatpush.msra.mxu0 %v312
  %900 = vmatpush.msra.mxu0 %v311
  %901 = vmatpush.msra.mxu0 %v310
  %902 = vmatpush.msra.mxu0 %v309
  %903 = vmatpush.msra.mxu0 %v308
  %904 = vmatmul.f32.gmra.mxu0 %v36
  %v905 = vpop.f32.mrf.mxu0
  %v906 = vadd.f32 %v886, %v905
  %907 = vdwg.mxu0
  %908 = vmatpush.msra.mxu0 %v339
  %909 = vmatpush.msra.mxu0 %v338
  %910 = vmatpush.msra.mxu0 %v337
  %911 = vmatpush.msra.mxu0 %v336
  %912 = vmatpush.msra.mxu0 %v335
  %913 = vmatpush.msra.mxu0 %v334
  %914 = vmatpush.msra.mxu0 %v333
  %915 = vmatpush.msra.mxu0 %v332
  %916 = vmatpush.msra.mxu0 %v331
  %917 = vmatpush.msra.mxu0 %v330
  %918 = vmatpush.msra.mxu0 %v329
  %919 = vmatpush.msra.mxu0 %v328
  %920 = vmatpush.msra.mxu0 %v327
  %921 = vmatpush.msra.mxu0 %v326
  %922 = vmatpush.msra.mxu0 %v325
  %923 = vmatpush.msra.mxu0 %v324
  %924 = vmatmul.f32.gmra.mxu0 %v37
  %v925 = vpop.f32.mrf.mxu0
  %v926 = vadd.f32 %v906, %v925
  %927 = vdwg.mxu0
  %928 = vmatpush.msra.mxu0 %v355
  %929 = vmatpush.msra.mxu0 %v354
  %930 = vmatpush.msra.mxu0 %v353
  %931 = vmatpush.msra.mxu0 %v352
  %932 = vmatpush.msra.mxu0 %v351
  %933 = vmatpush.msra.mxu0 %v350
  %934 = vmatpush.msra.mxu0 %v349
  %935 = vmatpush.msra.mxu0 %v348
  %936 = vmatpush.msra.mxu0 %v347
  %937 = vmatpush.msra.mxu0 %v346
  %938 = vmatpush.msra.mxu0 %v345
  %939 = vmatpush.msra.mxu0 %v344
  %940 = vmatpush.msra.mxu0 %v343
  %941 = vmatpush.msra.mxu0 %v342
  %942 = vmatpush.msra.mxu0 %v341
  %943 = vmatpush.msra.mxu0 %v340
  %944 = vmatmul.f32.gmra.mxu0 %v38
  %v945 = vpop.f32.mrf.mxu0
  %v946 = vadd.f32 %v926, %v945
  %947 = vdwg.mxu0
  %948 = vmatpush.msra.mxu0 %v371
  %949 = vmatpush.msra.mxu0 %v370
  %950 = vmatpush.msra.mxu0 %v369
  %951 = vmatpush.msra.mxu0 %v368
  %952 = vmatpush.msra.mxu0 %v367
  %953 = vmatpush.msra.mxu0 %v366
  %954 = vmatpush.msra.mxu0 %v365
  %955 = vmatpush.msra.mxu0 %v364
  %956 = vmatpush.msra.mxu0 %v363
  %957 = vmatpush.msra.mxu0 %v362
  %958 = vmatpush.msra.mxu0 %v361
  %959 = vmatpush.msra.mxu0 %v360
  %960 = vmatpush.msra.mxu0 %v359
  %961 = vmatpush.msra.mxu0 %v358
  %962 = vmatpush.msra.mxu0 %v357
  %963 = vmatpush.msra.mxu0 %v356
  %964 = vmatmul.f32.gmra.mxu0 %v39
  %v965 = vpop.f32.mrf.mxu0
  %v966 = vadd.f32 %v946, %v965
  %967 = vdwg.mxu0
  %968 = vmatpush.msra.mxu0 %v387
  %969 = vmatpush.msra.mxu0 %v386
  %970 = vmatpush.msra.mxu0 %v385
  %971 = vmatpush.msra.mxu0 %v384
  %972 = vmatpush.msra.mxu0 %v383
  %973 = vmatpush.msra.mxu0 %v382
  %974 = vmatpush.msra.mxu0 %v381
  %975 = vmatpush.msra.mxu0 %v380
  %976 = vmatpush.msra.mxu0 %v379
  %977 = vmatpush.msra.mxu0 %v378
  %978 = vmatpush.msra.mxu0 %v377
  %979 = vmatpush.msra.mxu0 %v376
  %980 = vmatpush.msra.mxu0 %v375
  %981 = vmatpush.msra.mxu0 %v374
  %982 = vmatpush.msra.mxu0 %v373
  %983 = vmatpush.msra.mxu0 %v372
  %984 = vmatmul.f32.gmra.mxu0 %v40
  %v985 = vpop.f32.mrf.mxu0
  %v986 = vadd.f32 %v966, %v985
  %987 = vdwg.mxu0
  %988 = vmatpush.msra.mxu0 %v403
  %989 = vmatpush.msra.mxu0 %v402
  %990 = vmatpush.msra.mxu0 %v401
  %991 = vmatpush.msra.mxu0 %v400
  %992 = vmatpush.msra.mxu0 %v399
  %993 = vmatpush.msra.mxu0 %v398
  %994 = vmatpush.msra.mxu0 %v397
  %995 = vmatpush.msra.mxu0 %v396
  %996 = vmatpush.msra.mxu0 %v395
  %997 = vmatpush.msra.mxu0 %v394
  %998 = vmatpush.msra.mxu0 %v393
  %999 = vmatpush.msra.mxu0 %v392
  %1000 = vmatpush.msra.mxu0 %v391
  %1001 = vmatpush.msra.mxu0 %v390
  %1002 = vmatpush.msra.mxu0 %v389
  %1003 = vmatpush.msra.mxu0 %v388
  %1004 = vmatmul.f32.gmra.mxu0 %v41
  %v1005 = vpop.f32.mrf.mxu0
  %v1006 = vadd.f32 %v986, %v1005
  %1007 = vdwg.mxu0
  %1008 = vmatpush.msra.mxu0 %v419
  %1009 = vmatpush.msra.mxu0 %v418
  %1010 = vmatpush.msra.mxu0 %v417
  %1011 = vmatpush.msra.mxu0 %v416
  %1012 = vmatpush.msra.mxu0 %v415
  %1013 = vmatpush.msra.mxu0 %v414
  %1014 = vmatpush.msra.mxu0 %v413
  %1015 = vmatpush.msra.mxu0 %v412
  %1016 = vmatpush.msra.mxu0 %v411
  %1017 = vmatpush.msra.mxu0 %v410
  %1018 = vmatpush.msra.mxu0 %v409
  %1019 = vmatpush.msra.mxu0 %v408
  %1020 = vmatpush.msra.mxu0 %v407
  %1021 = vmatpush.msra.mxu0 %v406
  %1022 = vmatpush.msra.mxu0 %v405
  %1023 = vmatpush.msra.mxu0 %v404
  %1024 = vmatmul.f32.gmra.mxu0 %v42
  %v1025 = vpop.f32.mrf.mxu0
  %v1026 = vadd.f32 %v1006, %v1025
  %1027 = vdwg.mxu0
  %1028 = vmatpush.msra.mxu0 %v435
  %1029 = vmatpush.msra.mxu0 %v434
  %1030 = vmatpush.msra.mxu0 %v433
  %1031 = vmatpush.msra.mxu0 %v432
  %1032 = vmatpush.msra.mxu0 %v431
  %1033 = vmatpush.msra.mxu0 %v430
  %1034 = vmatpush.msra.mxu0 %v429
  %1035 = vmatpush.msra.mxu0 %v428
  %1036 = vmatpush.msra.mxu0 %v427
  %1037 = vmatpush.msra.mxu0 %v426
  %1038 = vmatpush.msra.mxu0 %v425
  %1039 = vmatpush.msra.mxu0 %v424
  %1040 = vmatpush.msra.mxu0 %v423
  %1041 = vmatpush.msra.mxu0 %v422
  %1042 = vmatpush.msra.mxu0 %v421
  %1043 = vmatpush.msra.mxu0 %v420
  %1044 = vmatmul.f32.gmra.mxu0 %v43
  %v1045 = vpop.f32.mrf.mxu0
  %v1046 = vadd.f32 %v1026, %v1045
  %1047 = vdwg.mxu0
  %1048 = vmatpush.msra.mxu0 %v451
  %1049 = vmatpush.msra.mxu0 %v450
  %1050 = vmatpush.msra.mxu0 %v449
  %1051 = vmatpush.msra.mxu0 %v448
  %1052 = vmatpush.msra.mxu0 %v447
  %1053 = vmatpush.msra.mxu0 %v446
  %1054 = vmatpush.msra.mxu0 %v445
  %1055 = vmatpush.msra.mxu0 %v444
  %1056 = vmatpush.msra.mxu0 %v443
  %1057 = vmatpush.msra.mxu0 %v442
  %1058 = vmatpush.msra.mxu0 %v441
  %1059 = vmatpush.msra.mxu0 %v440
  %1060 = vmatpush.msra.mxu0 %v439
  %1061 = vmatpush.msra.mxu0 %v438
  %1062 = vmatpush.msra.mxu0 %v437
  %1063 = vmatpush.msra.mxu0 %v436
  %1064 = vmatmul.f32.gmra.mxu0 %v44
  %v1065 = vpop.f32.mrf.mxu0
  %v1066 = vadd.f32 %v1046, %v1065
  %1067 = vdwg.mxu0
  %1068 = vmatpush.msra.mxu0 %v467
  %1069 = vmatpush.msra.mxu0 %v466
  %1070 = vmatpush.msra.mxu0 %v465
  %1071 = vmatpush.msra.mxu0 %v464
  %1072 = vmatpush.msra.mxu0 %v463
  %1073 = vmatpush.msra.mxu0 %v462
  %1074 = vmatpush.msra.mxu0 %v461
  %1075 = vmatpush.msra.mxu0 %v460
  %1076 = vmatpush.msra.mxu0 %v459
  %1077 = vmatpush.msra.mxu0 %v458
  %1078 = vmatpush.msra.mxu0 %v457
  %1079 = vmatpush.msra.mxu0 %v456
  %1080 = vmatpush.msra.mxu0 %v455
  %1081 = vmatpush.msra.mxu0 %v454
  %1082 = vmatpush.msra.mxu0 %v453
  %1083 = vmatpush.msra.mxu0 %v452
  %1084 = vmatmul.f32.gmra.mxu0 %v45
  %v1085 = vpop.f32.mrf.mxu0
  %v1086 = vadd.f32 %v1066, %v1085
  %1087 = vdwg.mxu0
  %1088 = vmatpush.msra.mxu0 %v483
  %1089 = vmatpush.msra.mxu0 %v482
  %1090 = vmatpush.msra.mxu0 %v481
  %1091 = vmatpush.msra.mxu0 %v480
  %1092 = vmatpush.msra.mxu0 %v479
  %1093 = vmatpush.msra.mxu0 %v478
  %1094 = vmatpush.msra.mxu0 %v477
  %1095 = vmatpush.msra.mxu0 %v476
  %1096 = vmatpush.msra.mxu0 %v475
  %1097 = vmatpush.msra.mxu0 %v474
  %1098 = vmatpush.msra.mxu0 %v473
  %1099 = vmatpush.msra.mxu0 %v472
  %1100 = vmatpush.msra.mxu0 %v471
  %1101 = vmatpush.msra.mxu0 %v470
  %1102 = vmatpush.msra.mxu0 %v469
  %1103 = vmatpush.msra.mxu0 %v468
  %1104 = vmatmul.f32.gmra.mxu0 %v46
  %v1105 = vpop.f32.mrf.mxu0
  %v1106 = vadd.f32 %v1086, %v1105
  %1107 = vdwg.mxu0
  %1108 = vmatpush.msra.mxu0 %v499
  %1109 = vmatpush.msra.mxu0 %v498
  %1110 = vmatpush.msra.mxu0 %v497
  %1111 = vmatpush.msra.mxu0 %v496
  %1112 = vmatpush.msra.mxu0 %v495
  %1113 = vmatpush.msra.mxu0 %v494
  %1114 = vmatpush.msra.mxu0 %v493
  %1115 = vmatpush.msra.mxu0 %v492
  %1116 = vmatpush.msra.mxu0 %v491
  %1117 = vmatpush.msra.mxu0 %v490
  %1118 = vmatpush.msra.mxu0 %v489
  %1119 = vmatpush.msra.mxu0 %v488
  %1120 = vmatpush.msra.mxu0 %v487
  %1121 = vmatpush.msra.mxu0 %v486
  %1122 = vmatpush.msra.mxu0 %v485
  %1123 = vmatpush.msra.mxu0 %v484
  %1124 = vmatmul.f32.gmra.mxu0 %v47
  %v1125 = vpop.f32.mrf.mxu0
  %v1126 = vadd.f32 %v1106, %v1125
  %1127 = vdwg.mxu0
  %1128 = vmatpush.msra.mxu0 %v515
  %1129 = vmatpush.msra.mxu0 %v514
  %1130 = vmatpush.msra.mxu0 %v513
  %1131 = vmatpush.msra.mxu0 %v512
  %1132 = vmatpush.msra.mxu0 %v511
  %1133 = vmatpush.msra.mxu0 %v510
  %1134 = vmatpush.msra.mxu0 %v509
  %1135 = vmatpush.msra.mxu0 %v508
  %1136 = vmatpush.msra.mxu0 %v507
  %1137 = vmatpush.msra.mxu0 %v506
  %1138 = vmatpush.msra.mxu0 %v505
  %1139 = vmatpush.msra.mxu0 %v504
  %1140 = vmatpush.msra.mxu0 %v503
  %1141 = vmatpush.msra.mxu0 %v502
  %1142 = vmatpush.msra.mxu0 %v501
  %1143 = vmatpush.msra.mxu0 %v500
  %1144 = vmatmul.f32.gmra.mxu0 %v48
  %v1145 = vpop.f32.mrf.mxu0
  %v1146 = vadd.f32 %v1126, %v1145
  %1147 = vdwg.mxu0
  %1148 = vmatpush.msra.mxu0 %v531
  %1149 = vmatpush.msra.mxu0 %v530
  %1150 = vmatpush.msra.mxu0 %v529
  %1151 = vmatpush.msra.mxu0 %v528
  %1152 = vmatpush.msra.mxu0 %v527
  %1153 = vmatpush.msra.mxu0 %v526
  %1154 = vmatpush.msra.mxu0 %v525
  %1155 = vmatpush.msra.mxu0 %v524
  %1156 = vmatpush.msra.mxu0 %v523
  %1157 = vmatpush.msra.mxu0 %v522
  %1158 = vmatpush.msra.mxu0 %v521
  %1159 = vmatpush.msra.mxu0 %v520
  %1160 = vmatpush.msra.mxu0 %v519
  %1161 = vmatpush.msra.mxu0 %v518
  %1162 = vmatpush.msra.mxu0 %v517
  %1163 = vmatpush.msra.mxu0 %v516
  %1164 = vmatmul.f32.gmra.mxu0 %v49
  %v1165 = vpop.f32.mrf.mxu0
  %v1166 = vadd.f32 %v1146, %v1165
  %1167 = vdwg.mxu0
  %1168 = vmatpush.msra.mxu0 %v547
  %1169 = vmatpush.msra.mxu0 %v546
  %1170 = vmatpush.msra.mxu0 %v545
  %1171 = vmatpush.msra.mxu0 %v544
  %1172 = vmatpush.msra.mxu0 %v543
  %1173 = vmatpush.msra.mxu0 %v542
  %1174 = vmatpush.msra.mxu0 %v541
  %1175 = vmatpush.msra.mxu0 %v540
  %1176 = vmatpush.msra.mxu0 %v539
  %1177 = vmatpush.msra.mxu0 %v538
  %1178 = vmatpush.msra.mxu0 %v537
  %1179 = vmatpush.msra.mxu0 %v536
  %1180 = vmatpush.msra.mxu0 %v535
  %1181 = vmatpush.msra.mxu0 %v534
  %1182 = vmatpush.msra.mxu0 %v533
  %1183 = vmatpush.msra.mxu0 %v532
  %1184 = vmatmul.f32.gmra.mxu0 %v50
  %v1185 = vpop.f32.mrf.mxu0
  %v1186 = vadd.f32 %v1166, %v1185
  %1187 = vdwg.mxu0
  %1188 = vmatpush.msra.mxu0 %v563
  %1189 = vmatpush.msra.mxu0 %v562
  %1190 = vmatpush.msra.mxu0 %v561
  %1191 = vmatpush.msra.mxu0 %v560
  %1192 = vmatpush.msra.mxu0 %v559
  %1193 = vmatpush.msra.mxu0 %v558
  %1194 = vmatpush.msra.mxu0 %v557
  %1195 = vmatpush.msra.mxu0 %v556
  %1196 = vmatpush.msra.mxu0 %v555
  %1197 = vmatpush.msra.mxu0 %v554
  %1198 = vmatpush.msra.mxu0 %v553
  %1199 = vmatpush.msra.mxu0 %v552
  %1200 = vmatpush.msra.mxu0 %v551
  %1201 = vmatpush.msra.mxu0 %v550
  %1202 = vmatpush.msra.mxu0 %v549
  %1203 = vmatpush.msra.mxu0 %v548
  %1204 = vmatmul.f32.gmra.mxu0 %v51
  %v1205 = vpop.f32.mrf.mxu0
  %v1206 = vadd.f32 %v1186, %v1205
  %1207 = vdwg.mxu0
  %v1208 = vld [vmem:[%s3] sm:$0xff]
  %v1209 = vld [vmem:[%s3 + $0x8] sm:$0xff]
  %v1210 = vld [vmem:[%s3 + $0x10] sm:$0xff]
  %v1211 = vld [vmem:[%s3 + $0x18] sm:$0xff]
  %v1212 = vld [vmem:[%s3 + $0x20] sm:$0xff]
  %v1213 = vld [vmem:[%s3 + $0x28] sm:$0xff]
  %v1214 = vld [vmem:[%s3 + $0x30] sm:$0xff]
  %v1215 = vld [vmem:[%s3 + $0x38] sm:$0xff]
  %v1216 = vld [vmem:[%s4] sm:$0x1]
  %v1218 = vperm.slane %v1216, 0
  %vm1220 = vcmask 523264
  %v1222 = vsel %vm1220, %v1206, 0
  %1224 = vmatpush.msra.mxu0 0.0
  %1225 = vmatpush.msra.mxu0 0.0
  %1226 = vmatpush.msra.mxu0 0.0
  %1227 = vmatpush.msra.mxu0 0.0
  %1228 = vmatpush.msra.mxu0 0.0
  %1229 = vmatpush.msra.mxu0 0.0
  %1230 = vmatpush.msra.mxu0 0.0
  %1231 = vmatpush.msra.mxu0 0.0
  %1232 = vmatpush.msra.mxu0 %v1215
  %1233 = vmatpush.msra.mxu0 %v1214
  %1234 = vmatpush.msra.mxu0 %v1213
  %1235 = vmatpush.msra.mxu0 %v1212
  %1236 = vmatpush.msra.mxu0 %v1211
  %1237 = vmatpush.msra.mxu0 %v1210
  %1238 = vmatpush.msra.mxu0 %v1209
  %1239 = vmatpush.msra.mxu0 %v1208
  %1240 = vmatmul.f32.gmra.mxu0 %v1222
  %v1241 = vpop.f32.mrf.mxu0
  %v1242 = vadd.f32 %v1218, %v1241
  %1243 = vdwg.mxu0
  %1244 = vst [vmem:[%s5] sm:$0xff] %v1242
  // Predicated region
  $region22: #{cnn_1c_forward.3} parent=0 // pred_check
    _
  $region23: #{cnn_1c_forward.3} parent=0 // pred_check_branch
    %1246 = sbr.rel (0) target = $region25
  $region24: #{cnn_1c_forward.3} parent=0 // pred_region
    _
  $region25: #{cnn_1c_forward.3} parent=0 // pred_fallthru
    _
  // Predicated region
  $region26: #{cnn_1c_forward.3} parent=0 // pred_check
    _
  $region27: #{cnn_1c_forward.3} parent=0 // pred_check_branch
    %1248 = sbr.rel (0) target = $region29
  $region28: #{cnn_1c_forward.3} parent=0 // pred_region
    _
  $region29: #{cnn_1c_forward.3} parent=0 // pred_fallthru
    _

</llo_original>
